<compile_context>
chip_gen: v6e
topology: v6e:2x2x1
jax: 0.10.0
libtpu: 0.0.40
codegen_flags: <defaults>
</compile_context>

<pallas_src>
import numpy as np
import jax
import jax.numpy as jnp
from jax import lax
from jax.experimental import pallas as pl
from jax.experimental.pallas import tpu as pltpu

# ---- PosteriorEncoder hyperparameters (small synthetic sizes) ----
B = 2          # batch
IN_CH = 4      # in_channels  (linear-spectrogram channels)
OUT_CH = 4     # out_channels (dim of z)
HIDDEN = 32    # hidden_channels
KSIZE = 5      # WN kernel_size (odd)
DIL_RATE = 2   # WN dilation_rate
N_LAYERS = 3   # WN n_layers
T = 16         # sequence length
# gin_channels = 0  -> g is None, g_l == zeros (cond path folded away)

ROWS = B * T            # batch folded into matmul rows
OUT_PAD = 128           # lane-dense packed output width (z | mean | logs | 0-pad)
IO_PAD = 128            # lane-dense packed input slab width
PP_ROWS = 8 + HIDDEN    # rows of the small pre/proj parameter slab (= 40)


def _posterior_encoder_kernel(io_ref, masks_ref, in_w_ref, rs_w_ref, b_ref,
                              pp_ref, out_ref):
    # ---- unpack lane-dense io slab: [ x | 1 | noise | mask | 0-pad ] ----
    x_aug = io_ref[:, 0:IN_CH + 1]                               # (ROWS, IN_CH+1)
    noise = io_ref[:, IN_CH + 1:IN_CH + 1 + OUT_CH]              # (ROWS, OUT_CH)
    mask = io_ref[:, IN_CH + 1 + OUT_CH:IN_CH + 2 + OUT_CH]      # (ROWS, 1)
    mask_h = jnp.broadcast_to(mask, (ROWS, HIDDEN))              # hoisted once

    # ---- unpack small parameter slab ----
    pre_w = pp_ref[0:IN_CH + 1, 0:HIDDEN]                        # (IN_CH+1, H), bias row folded in
    proj_b = pp_ref[5:6, 0:2 * OUT_CH]                           # (1, 2*OUT)
    proj_w = pp_ref[8:8 + HIDDEN, 0:2 * OUT_CH]                  # (H, 2*OUT)

    # ---- pre: Conv1d(in_ch, hidden, 1), bias via augmented ones column ----
    h = jnp.dot(x_aug, pre_w, preferred_element_type=jnp.float32) * mask_h

    # ---- WN ----
    skip = jnp.zeros((ROWS, HIDDEN), jnp.float32)
    m_idx = 0
    for i in range(N_LAYERS):
        d = DIL_RATE ** i
        pad = d * (KSIZE - 1) // 2

        # im2col: K time-shifted copies of h stacked along lanes -> (ROWS, K*H).
        # Shifts are sublane rolls; sequence-edge / batch-boundary rows are
        # zeroed by precomputed static validity masks.
        taps = []
        for j in range(KSIZE):
            s = j * d - pad                                      # static tap shift
            if s == 0:
                taps.append(h)
            else:
                rolled = pltpu.roll(h, shift=(-s) % ROWS, axis=0)
                taps.append(rolled * masks_ref[m_idx])
                m_idx += 1
        stacked = jnp.concatenate(taps, axis=1)                  # (ROWS, K*H)

        b = b_ref[i]                                             # (1, 4H) = [in_b | rs_b]

        # single fused gate matmul (tanh half | sigmoid half)
        gate = (jnp.dot(stacked, in_w_ref[i],
                        preferred_element_type=jnp.float32)
                + b[:, 0:2 * HIDDEN])                            # (ROWS, 2H)
        pre_t = gate[:, 0:HIDDEN]
        pre_s = gate[:, HIDDEN:2 * HIDDEN]
        # sigmoid(x) = 0.5*(1 + tanh(0.5*x)) : one EUP push instead of two
        acts = jnp.tanh(pre_t) * (0.5 * (jnp.tanh(0.5 * pre_s) + 1.0))
        # dropout_ratio = 0 -> identity

        # single fused res|skip 1x1 conv (last layer: res half is zero-padded)
        rs = (jnp.dot(acts, rs_w_ref[i],
                      preferred_element_type=jnp.float32)
              + b[:, 2 * HIDDEN:4 * HIDDEN])                     # (ROWS, 2H)
        skip = skip + rs[:, HIDDEN:2 * HIDDEN]
        if i < N_LAYERS - 1:
            h = (h + rs[:, 0:HIDDEN]) * mask_h

    enc = skip * mask_h                                          # (ROWS, H)

    # ---- proj: single fused Conv1d(hidden, 2*out, 1) ----
    stats = (jnp.dot(enc, proj_w, preferred_element_type=jnp.float32)
             + proj_b) * mask                                    # (ROWS, 2*OUT)
    mean = stats[:, 0:OUT_CH]
    logs = stats[:, OUT_CH:2 * OUT_CH]
    z = (mean + noise * jnp.exp(logs)) * mask

    # single lane-dense packed output slab: [ z | mean | logs | zeros ]
    out_ref[...] = jnp.concatenate(
        [z, mean, logs,
         jnp.zeros((ROWS, OUT_PAD - 3 * OUT_CH), jnp.float32)], axis=1)


def pack_params(params):
    """One-time parameter re-layout (hoisted out of the forward path)."""
    f32 = jnp.float32

    # pre: (H, IN_CH, 1) -> (IN_CH, H), bias folded in as an extra row
    pre_w_aug = jnp.concatenate(
        [params['pre_w'][:, :, 0].T, params['pre_b'][None, :]], axis=0)  # (IN_CH+1, H)

    in_w, rs_w, biases = [], [], []
    for i in range(N_LAYERS):
        # dilated conv weight (2H, H, K) -> im2col layout (K*H, 2H), tap-major
        wf = jnp.transpose(params['in_w'][i], (2, 1, 0)).reshape(
            KSIZE * HIDDEN, 2 * HIDDEN)
        in_w.append(wf)

        rw = params['rs_w'][i][:, :, 0]                          # (rsch, H)
        rb = params['rs_b'][i]
        if i < N_LAYERS - 1:
            rs_w.append(rw.T)                                    # (H, 2H): [res | skip]
            rs_b_full = rb                                       # (2H,)
        else:
            rs_w.append(jnp.concatenate(
                [jnp.zeros((HIDDEN, HIDDEN), f32), rw.T], axis=1))
            rs_b_full = jnp.concatenate([jnp.zeros((HIDDEN,), f32), rb])
        biases.append(jnp.concatenate([params['in_b'][i], rs_b_full])[None, :])

    in_w = jnp.stack(in_w)                                       # (L, K*H, 2H)
    rs_w = jnp.stack(rs_w)                                       # (L, H, 2H)
    biases = jnp.stack(biases)                                   # (L, 1, 4H=128)

    # small slab with pre / proj parameters
    pp = jnp.zeros((PP_ROWS, 128), f32)
    pp = pp.at[0:IN_CH + 1, 0:HIDDEN].set(pre_w_aug)
    pp = pp.at[5, 0:2 * OUT_CH].set(params['proj_b'])
    pp = pp.at[8:8 + HIDDEN, 0:2 * OUT_CH].set(params['proj_w'][:, :, 0].T)

    # static per-(layer, tap) validity masks (depend only on T and tap shift)
    t_idx = np.tile(np.arange(T), B)
    masks = []
    for i in range(N_LAYERS):
        d = DIL_RATE ** i
        pad = d * (KSIZE - 1) // 2
        for j in range(KSIZE):
            s = j * d - pad
            if s == 0:
                continue
            valid = ((t_idx + s >= 0) & (t_idx + s < T)).astype(np.float32)
            masks.append(np.broadcast_to(valid[:, None], (ROWS, HIDDEN)).copy())
    tap_masks = jnp.asarray(np.stack(masks))                     # (L*(K-1), ROWS, H)

    return {'pp': pp, 'in_w': in_w, 'rs_w': rs_w,
            'biases': biases, 'tap_masks': tap_masks}


def posterior_encoder_pallas(linspec_nct, lengths, noise_nct, packed):
    """linspec_nct: (B, IN_CH, T); lengths: (B,) int32; noise_nct: (B, OUT_CH, T)."""
    x = jnp.transpose(linspec_nct, (0, 2, 1)).reshape(ROWS, IN_CH).astype(jnp.float32)
    noise = jnp.transpose(noise_nct, (0, 2, 1)).reshape(ROWS, OUT_CH).astype(jnp.float32)

    # sequence mask computed in the wrapper (trivial iota compare)
    mask_bt = (jnp.arange(T)[None, :] < lengths[:, None]).astype(jnp.float32)  # (B, T)
    mask_rows = mask_bt.reshape(ROWS, 1)

    # single lane-dense input slab: [ x | 1 | noise | mask | 0-pad ]
    ncols = IN_CH + 1 + OUT_CH + 1
    io = jnp.concatenate(
        [x, jnp.ones((ROWS, 1), jnp.float32), noise, mask_rows,
         jnp.zeros((ROWS, IO_PAD - ncols), jnp.float32)], axis=1)

    # single invocation, full arrays in VMEM (no grid -> no double buffering)
    packed_out = pl.pallas_call(
        _posterior_encoder_kernel,
        out_shape=jax.ShapeDtypeStruct((ROWS, OUT_PAD), jnp.float32),
    )(io, packed['tap_masks'], packed['in_w'], packed['rs_w'],
      packed['biases'], packed['pp'])

    def to_nct(flat):
        return jnp.transpose(flat.reshape(B, T, OUT_CH), (0, 2, 1))

    z = to_nct(packed_out[:, :OUT_CH])
    mean = to_nct(packed_out[:, OUT_CH:2 * OUT_CH])
    logs = to_nct(packed_out[:, 2 * OUT_CH:3 * OUT_CH])
    mask = mask_bt[:, None, :]                                   # (B, 1, T)
    return z, mean, logs, mask


posterior_encoder_pallas_jit = jax.jit(posterior_encoder_pallas)


# ---------------- pure-JAX reference (NCT, lax conv) for verification -------
def reference_forward(linspec, lengths, noise, params):
    _, _, t = linspec.shape
    mask = (jnp.arange(t)[None, :] < lengths[:, None]).astype(jnp.float32)[:, None, :]

    def conv1d(xx, w, b, dilation=1):
        pad = dilation * (w.shape[-1] - 1) // 2
        y = lax.conv_general_dilated(xx, w, window_strides=(1,),
                                     padding=[(pad, pad)], rhs_dilation=(dilation,),
                                     dimension_numbers=('NCH', 'OIH', 'NCH'))
        return y + b[None, :, None]

    x = conv1d(linspec, params['pre_w'], params['pre_b']) * mask
    output = jnp.zeros_like(x)
    for i in range(N_LAYERS):
        d = DIL_RATE ** i
        x_in = conv1d(x, params['in_w'][i], params['in_b'][i], dilation=d)
        acts = jnp.tanh(x_in[:, :HIDDEN, :]) * jax.nn.sigmoid(x_in[:, HIDDEN:, :])
        rs = conv1d(acts, params['rs_w'][i], params['rs_b'][i])
        if i < N_LAYERS - 1:
            x = (x + rs[:, :HIDDEN, :]) * mask
            output = output + rs[:, HIDDEN:, :]
        else:
            output = output + rs
    enc = output * mask
    stats = conv1d(enc, params['proj_w'], params['proj_b']) * mask
    mean = stats[:, :OUT_CH, :]
    logs = stats[:, OUT_CH:, :]
    z = (mean + noise * jnp.exp(logs)) * mask
    return z, mean, logs, mask


def init_params(key):
    ks = list(jax.random.split(key, 4 + 4 * N_LAYERS))
    s = 0.1
    params = {
        'pre_w': s * jax.random.normal(ks[0], (HIDDEN, IN_CH, 1), jnp.float32),
        'pre_b': s * jax.random.normal(ks[1], (HIDDEN,), jnp.float32),
        'proj_w': s * jax.random.normal(ks[2], (2 * OUT_CH, HIDDEN, 1), jnp.float32),
        'proj_b': s * jax.random.normal(ks[3], (2 * OUT_CH,), jnp.float32),
        'in_w': [], 'in_b': [], 'rs_w': [], 'rs_b': [],
    }
    for i in range(N_LAYERS):
        rsch = 2 * HIDDEN if i < N_LAYERS - 1 else HIDDEN
        k0, k1, k2, k3 = ks[4 + 4 * i: 8 + 4 * i]
        params['in_w'].append(s * jax.random.normal(k0, (2 * HIDDEN, HIDDEN, KSIZE), jnp.float32))
        params['in_b'].append(s * jax.random.normal(k1, (2 * HIDDEN,), jnp.float32))
        params['rs_w'].append(s * jax.random.normal(k2, (rsch, HIDDEN, 1), jnp.float32))
        params['rs_b'].append(s * jax.random.normal(k3, (rsch,), jnp.float32))
    return params


if __name__ == "__main__":
    key = jax.random.PRNGKey(0)
    k_param, k_x, k_noise = jax.random.split(key, 3)

    params = init_params(k_param)
    packed = pack_params(params)                                 # one-time layout
    linspec = jax.random.normal(k_x, (B, IN_CH, T), jnp.float32)       # NCT
    lengths = jnp.array([T, T - 6], dtype=jnp.int32)
    # TODO(synk): torch.randn_like has no in-kernel equivalent here; a
    # deterministic normal-noise input stands in for it.
    noise = jax.random.normal(k_noise, (B, OUT_CH, T), jnp.float32)

    z, mean, logs, mask = posterior_encoder_pallas_jit(linspec, lengths, noise, packed)
    jax.block_until_ready((z, mean, logs, mask))

    z_r, mean_r, logs_r, mask_r = reference_forward(linspec, lengths, noise, params)
    assert jnp.allclose(mask, mask_r, atol=1e-5), "mask mismatch"
    assert jnp.allclose(mean, mean_r, atol=1e-4, rtol=1e-4), "mean mismatch"
    assert jnp.allclose(logs, logs_r, atol=1e-4, rtol=1e-4), "logs mismatch"
    assert jnp.allclose(z, z_r, atol=1e-4, rtol=1e-4), "z mismatch"
    print("KERNEL_OK")
</pallas_src>

<mosaic_0001>
module attributes {stable_mosaic.version = 11 : i64} {
  func.func @_posterior_encoder_kernel(%arg0: memref<32x128xf32, #tpu.memory_space<vmem>>, %arg1: memref<12x32x32xf32, #tpu.memory_space<vmem>>, %arg2: memref<3x160x64xf32, #tpu.memory_space<vmem>>, %arg3: memref<3x32x64xf32, #tpu.memory_space<vmem>>, %arg4: memref<3x1x128xf32, #tpu.memory_space<vmem>>, %arg5: memref<40x128xf32, #tpu.memory_space<vmem>>, %arg6: memref<32x128xf32, #tpu.memory_space<vmem>>) attributes {dimension_semantics = [], scalar_prefetch = 0 : i64, scratch_operands = 0 : i64, tpu.core_type = #tpu.core_type<tc>} {
    %c0 = arith.constant 0 : index
    %c0_0 = arith.constant 0 : index
    %0 = vector.load %arg0[%c0, %c0_0] : memref<32x128xf32, #tpu.memory_space<vmem>>, vector<32x5xf32>
    %c0_1 = arith.constant 0 : index
    %c5 = arith.constant 5 : index
    %1 = vector.load %arg0[%c0_1, %c5] : memref<32x128xf32, #tpu.memory_space<vmem>>, vector<32x4xf32>
    %c0_2 = arith.constant 0 : index
    %c9 = arith.constant 9 : index
    %2 = vector.load %arg0[%c0_2, %c9] : memref<32x128xf32, #tpu.memory_space<vmem>>, vector<32x1xf32>
    %3 = vector.shape_cast %2 : vector<32x1xf32> to vector<32x1xf32>
    %4 = vector.broadcast %3 : vector<32x1xf32> to vector<32x32xf32>
    %c0_3 = arith.constant 0 : index
    %c0_4 = arith.constant 0 : index
    %5 = vector.load %arg5[%c0_3, %c0_4] : memref<40x128xf32, #tpu.memory_space<vmem>>, vector<5x32xf32>
    %c5_5 = arith.constant 5 : index
    %c0_6 = arith.constant 0 : index
    %6 = vector.load %arg5[%c5_5, %c0_6] : memref<40x128xf32, #tpu.memory_space<vmem>>, vector<1x8xf32>
    %c8 = arith.constant 8 : index
    %c0_7 = arith.constant 0 : index
    %7 = vector.load %arg5[%c8, %c0_7] : memref<40x128xf32, #tpu.memory_space<vmem>>, vector<32x8xf32>
    %cst = arith.constant dense<0.000000e+00> : vector<32x32xf32>
    %8 = tpu.matmul %0, %5, %cst {dimension_numbers = #tpu.dot_dimension_numbers<[1], [0], [0], [1], [0, 0, 1, 1], [], []>} : vector<32x5xf32>, vector<5x32xf32>, vector<32x32xf32> -> vector<32x32xf32>
    %9 = arith.mulf %8, %4 : vector<32x32xf32>
    %cst_8 = arith.constant 0.000000e+00 : f32
    %10 = vector.broadcast %cst_8 : f32 to vector<32x32xf32>
    %c2_i32 = arith.constant 2 : i32
    %11 = tpu.dynamic_rotate %9 by %c2_i32 dim 0 : vector<32x32xf32>, i32 -> vector<32x32xf32>
    %c0_9 = arith.constant 0 : index
    %c0_10 = arith.constant 0 : index
    %c0_11 = arith.constant 0 : index
    %12 = vector.load %arg1[%c0_9, %c0_10, %c0_11] : memref<12x32x32xf32, #tpu.memory_space<vmem>>, vector<1x32x32xf32>
    %13 = vector.shape_cast %12 : vector<1x32x32xf32> to vector<32x32xf32>
    %14 = arith.mulf %11, %13 : vector<32x32xf32>
    %c1_i32 = arith.constant 1 : i32
    %15 = tpu.dynamic_rotate %9 by %c1_i32 dim 0 : vector<32x32xf32>, i32 -> vector<32x32xf32>
    %c1 = arith.constant 1 : index
    %c0_12 = arith.constant 0 : index
    %c0_13 = arith.constant 0 : index
    %16 = vector.load %arg1[%c1, %c0_12, %c0_13] : memref<12x32x32xf32, #tpu.memory_space<vmem>>, vector<1x32x32xf32>
    %17 = vector.shape_cast %16 : vector<1x32x32xf32> to vector<32x32xf32>
    %18 = arith.mulf %15, %17 : vector<32x32xf32>
    %c31_i32 = arith.constant 31 : i32
    %19 = tpu.dynamic_rotate %9 by %c31_i32 dim 0 : vector<32x32xf32>, i32 -> vector<32x32xf32>
    %c2 = arith.constant 2 : index
    %c0_14 = arith.constant 0 : index
    %c0_15 = arith.constant 0 : index
    %20 = vector.load %arg1[%c2, %c0_14, %c0_15] : memref<12x32x32xf32, #tpu.memory_space<vmem>>, vector<1x32x32xf32>
    %21 = vector.shape_cast %20 : vector<1x32x32xf32> to vector<32x32xf32>
    %22 = arith.mulf %19, %21 : vector<32x32xf32>
    %c30_i32 = arith.constant 30 : i32
    %23 = tpu.dynamic_rotate %9 by %c30_i32 dim 0 : vector<32x32xf32>, i32 -> vector<32x32xf32>
    %c3 = arith.constant 3 : index
    %c0_16 = arith.constant 0 : index
    %c0_17 = arith.constant 0 : index
    %24 = vector.load %arg1[%c3, %c0_16, %c0_17] : memref<12x32x32xf32, #tpu.memory_space<vmem>>, vector<1x32x32xf32>
    %25 = vector.shape_cast %24 : vector<1x32x32xf32> to vector<32x32xf32>
    %26 = arith.mulf %23, %25 : vector<32x32xf32>
    %27 = tpu.concatenate %14, %18, %9, %22, %26 in 1 : vector<32x32xf32>, vector<32x32xf32>, vector<32x32xf32>, vector<32x32xf32>, vector<32x32xf32> -> vector<32x160xf32>
    %c0_18 = arith.constant 0 : index
    %c0_19 = arith.constant 0 : index
    %c0_20 = arith.constant 0 : index
    %28 = vector.load %arg4[%c0_18, %c0_19, %c0_20] : memref<3x1x128xf32, #tpu.memory_space<vmem>>, vector<1x1x128xf32>
    %29 = vector.shape_cast %28 : vector<1x1x128xf32> to vector<1x128xf32>
    %c0_21 = arith.constant 0 : index
    %c0_22 = arith.constant 0 : index
    %c0_23 = arith.constant 0 : index
    %30 = vector.load %arg2[%c0_21, %c0_22, %c0_23] : memref<3x160x64xf32, #tpu.memory_space<vmem>>, vector<1x160x64xf32>
    %31 = vector.shape_cast %30 : vector<1x160x64xf32> to vector<160x64xf32>
    %cst_24 = arith.constant dense<0.000000e+00> : vector<32x64xf32>
    %32 = tpu.matmul %27, %31, %cst_24 {dimension_numbers = #tpu.dot_dimension_numbers<[1], [0], [0], [1], [0, 0, 1, 1], [], []>} : vector<32x160xf32>, vector<160x64xf32>, vector<32x64xf32> -> vector<32x64xf32>
    %33 = vector.extract_strided_slice %29 {offsets = [0, 0], sizes = [1, 64], strides = [1, 1]} : vector<1x128xf32> to vector<1x64xf32>
    %34 = vector.broadcast %33 : vector<1x64xf32> to vector<32x64xf32>
    %35 = arith.addf %32, %34 : vector<32x64xf32>
    %36 = vector.extract_strided_slice %35 {offsets = [0, 0], sizes = [32, 32], strides = [1, 1]} : vector<32x64xf32> to vector<32x32xf32>
    %37 = vector.extract_strided_slice %35 {offsets = [0, 32], sizes = [32, 32], strides = [1, 1]} : vector<32x64xf32> to vector<32x32xf32>
    %38 = math.tanh %36 : vector<32x32xf32>
    %cst_25 = arith.constant 5.000000e-01 : f32
    %39 = vector.broadcast %cst_25 : f32 to vector<32x32xf32>
    %40 = arith.mulf %39, %37 : vector<32x32xf32>
    %41 = math.tanh %40 : vector<32x32xf32>
    %cst_26 = arith.constant 1.000000e+00 : f32
    %42 = vector.broadcast %cst_26 : f32 to vector<32x32xf32>
    %43 = arith.addf %41, %42 : vector<32x32xf32>
    %cst_27 = arith.constant 5.000000e-01 : f32
    %44 = vector.broadcast %cst_27 : f32 to vector<32x32xf32>
    %45 = arith.mulf %44, %43 : vector<32x32xf32>
    %46 = arith.mulf %38, %45 : vector<32x32xf32>
    %c0_28 = arith.constant 0 : index
    %c0_29 = arith.constant 0 : index
    %c0_30 = arith.constant 0 : index
    %47 = vector.load %arg3[%c0_28, %c0_29, %c0_30] : memref<3x32x64xf32, #tpu.memory_space<vmem>>, vector<1x32x64xf32>
    %48 = vector.shape_cast %47 : vector<1x32x64xf32> to vector<32x64xf32>
    %cst_31 = arith.constant dense<0.000000e+00> : vector<32x64xf32>
    %49 = tpu.matmul %46, %48, %cst_31 {dimension_numbers = #tpu.dot_dimension_numbers<[1], [0], [0], [1], [0, 0, 1, 1], [], []>} : vector<32x32xf32>, vector<32x64xf32>, vector<32x64xf32> -> vector<32x64xf32>
    %50 = vector.extract_strided_slice %29 {offsets = [0, 64], sizes = [1, 64], strides = [1, 1]} : vector<1x128xf32> to vector<1x64xf32>
    %51 = vector.broadcast %50 : vector<1x64xf32> to vector<32x64xf32>
    %52 = arith.addf %49, %51 : vector<32x64xf32>
    %53 = vector.extract_strided_slice %52 {offsets = [0, 32], sizes = [32, 32], strides = [1, 1]} : vector<32x64xf32> to vector<32x32xf32>
    %54 = arith.addf %10, %53 : vector<32x32xf32>
    %55 = vector.extract_strided_slice %52 {offsets = [0, 0], sizes = [32, 32], strides = [1, 1]} : vector<32x64xf32> to vector<32x32xf32>
    %56 = arith.addf %9, %55 : vector<32x32xf32>
    %57 = arith.mulf %56, %4 : vector<32x32xf32>
    %c4_i32 = arith.constant 4 : i32
    %58 = tpu.dynamic_rotate %57 by %c4_i32 dim 0 : vector<32x32xf32>, i32 -> vector<32x32xf32>
    %c4 = arith.constant 4 : index
    %c0_32 = arith.constant 0 : index
    %c0_33 = arith.constant 0 : index
    %59 = vector.load %arg1[%c4, %c0_32, %c0_33] : memref<12x32x32xf32, #tpu.memory_space<vmem>>, vector<1x32x32xf32>
    %60 = vector.shape_cast %59 : vector<1x32x32xf32> to vector<32x32xf32>
    %61 = arith.mulf %58, %60 : vector<32x32xf32>
    %c2_i32_34 = arith.constant 2 : i32
    %62 = tpu.dynamic_rotate %57 by %c2_i32_34 dim 0 : vector<32x32xf32>, i32 -> vector<32x32xf32>
    %c5_35 = arith.constant 5 : index
    %c0_36 = arith.constant 0 : index
    %c0_37 = arith.constant 0 : index
    %63 = vector.load %arg1[%c5_35, %c0_36, %c0_37] : memref<12x32x32xf32, #tpu.memory_space<vmem>>, vector<1x32x32xf32>
    %64 = vector.shape_cast %63 : vector<1x32x32xf32> to vector<32x32xf32>
    %65 = arith.mulf %62, %64 : vector<32x32xf32>
    %c30_i32_38 = arith.constant 30 : i32
    %66 = tpu.dynamic_rotate %57 by %c30_i32_38 dim 0 : vector<32x32xf32>, i32 -> vector<32x32xf32>
    %c6 = arith.constant 6 : index
    %c0_39 = arith.constant 0 : index
    %c0_40 = arith.constant 0 : index
    %67 = vector.load %arg1[%c6, %c0_39, %c0_40] : memref<12x32x32xf32, #tpu.memory_space<vmem>>, vector<1x32x32xf32>
    %68 = vector.shape_cast %67 : vector<1x32x32xf32> to vector<32x32xf32>
    %69 = arith.mulf %66, %68 : vector<32x32xf32>
    %c28_i32 = arith.constant 28 : i32
    %70 = tpu.dynamic_rotate %57 by %c28_i32 dim 0 : vector<32x32xf32>, i32 -> vector<32x32xf32>
    %c7 = arith.constant 7 : index
    %c0_41 = arith.constant 0 : index
    %c0_42 = arith.constant 0 : index
    %71 = vector.load %arg1[%c7, %c0_41, %c0_42] : memref<12x32x32xf32, #tpu.memory_space<vmem>>, vector<1x32x32xf32>
    %72 = vector.shape_cast %71 : vector<1x32x32xf32> to vector<32x32xf32>
    %73 = arith.mulf %70, %72 : vector<32x32xf32>
    %74 = tpu.concatenate %61, %65, %57, %69, %73 in 1 : vector<32x32xf32>, vector<32x32xf32>, vector<32x32xf32>, vector<32x32xf32>, vector<32x32xf32> -> vector<32x160xf32>
    %c1_43 = arith.constant 1 : index
    %c0_44 = arith.constant 0 : index
    %c0_45 = arith.constant 0 : index
    %75 = vector.load %arg4[%c1_43, %c0_44, %c0_45] : memref<3x1x128xf32, #tpu.memory_space<vmem>>, vector<1x1x128xf32>
    %76 = vector.shape_cast %75 : vector<1x1x128xf32> to vector<1x128xf32>
    %c1_46 = arith.constant 1 : index
    %c0_47 = arith.constant 0 : index
    %c0_48 = arith.constant 0 : index
    %77 = vector.load %arg2[%c1_46, %c0_47, %c0_48] : memref<3x160x64xf32, #tpu.memory_space<vmem>>, vector<1x160x64xf32>
    %78 = vector.shape_cast %77 : vector<1x160x64xf32> to vector<160x64xf32>
    %cst_49 = arith.constant dense<0.000000e+00> : vector<32x64xf32>
    %79 = tpu.matmul %74, %78, %cst_49 {dimension_numbers = #tpu.dot_dimension_numbers<[1], [0], [0], [1], [0, 0, 1, 1], [], []>} : vector<32x160xf32>, vector<160x64xf32>, vector<32x64xf32> -> vector<32x64xf32>
    %80 = vector.extract_strided_slice %76 {offsets = [0, 0], sizes = [1, 64], strides = [1, 1]} : vector<1x128xf32> to vector<1x64xf32>
    %81 = vector.broadcast %80 : vector<1x64xf32> to vector<32x64xf32>
    %82 = arith.addf %79, %81 : vector<32x64xf32>
    %83 = vector.extract_strided_slice %82 {offsets = [0, 0], sizes = [32, 32], strides = [1, 1]} : vector<32x64xf32> to vector<32x32xf32>
    %84 = vector.extract_strided_slice %82 {offsets = [0, 32], sizes = [32, 32], strides = [1, 1]} : vector<32x64xf32> to vector<32x32xf32>
    %85 = math.tanh %83 : vector<32x32xf32>
    %cst_50 = arith.constant 5.000000e-01 : f32
    %86 = vector.broadcast %cst_50 : f32 to vector<32x32xf32>
    %87 = arith.mulf %86, %84 : vector<32x32xf32>
    %88 = math.tanh %87 : vector<32x32xf32>
    %cst_51 = arith.constant 1.000000e+00 : f32
    %89 = vector.broadcast %cst_51 : f32 to vector<32x32xf32>
    %90 = arith.addf %88, %89 : vector<32x32xf32>
    %cst_52 = arith.constant 5.000000e-01 : f32
    %91 = vector.broadcast %cst_52 : f32 to vector<32x32xf32>
    %92 = arith.mulf %91, %90 : vector<32x32xf32>
    %93 = arith.mulf %85, %92 : vector<32x32xf32>
    %c1_53 = arith.constant 1 : index
    %c0_54 = arith.constant 0 : index
    %c0_55 = arith.constant 0 : index
    %94 = vector.load %arg3[%c1_53, %c0_54, %c0_55] : memref<3x32x64xf32, #tpu.memory_space<vmem>>, vector<1x32x64xf32>
    %95 = vector.shape_cast %94 : vector<1x32x64xf32> to vector<32x64xf32>
    %cst_56 = arith.constant dense<0.000000e+00> : vector<32x64xf32>
    %96 = tpu.matmul %93, %95, %cst_56 {dimension_numbers = #tpu.dot_dimension_numbers<[1], [0], [0], [1], [0, 0, 1, 1], [], []>} : vector<32x32xf32>, vector<32x64xf32>, vector<32x64xf32> -> vector<32x64xf32>
    %97 = vector.extract_strided_slice %76 {offsets = [0, 64], sizes = [1, 64], strides = [1, 1]} : vector<1x128xf32> to vector<1x64xf32>
    %98 = vector.broadcast %97 : vector<1x64xf32> to vector<32x64xf32>
    %99 = arith.addf %96, %98 : vector<32x64xf32>
    %100 = vector.extract_strided_slice %99 {offsets = [0, 32], sizes = [32, 32], strides = [1, 1]} : vector<32x64xf32> to vector<32x32xf32>
    %101 = arith.addf %54, %100 : vector<32x32xf32>
    %102 = vector.extract_strided_slice %99 {offsets = [0, 0], sizes = [32, 32], strides = [1, 1]} : vector<32x64xf32> to vector<32x32xf32>
    %103 = arith.addf %57, %102 : vector<32x32xf32>
    %104 = arith.mulf %103, %4 : vector<32x32xf32>
    %c8_i32 = arith.constant 8 : i32
    %105 = tpu.dynamic_rotate %104 by %c8_i32 dim 0 : vector<32x32xf32>, i32 -> vector<32x32xf32>
    %c8_57 = arith.constant 8 : index
    %c0_58 = arith.constant 0 : index
    %c0_59 = arith.constant 0 : index
    %106 = vector.load %arg1[%c8_57, %c0_58, %c0_59] : memref<12x32x32xf32, #tpu.memory_space<vmem>>, vector<1x32x32xf32>
    %107 = vector.shape_cast %106 : vector<1x32x32xf32> to vector<32x32xf32>
    %108 = arith.mulf %105, %107 : vector<32x32xf32>
    %c4_i32_60 = arith.constant 4 : i32
    %109 = tpu.dynamic_rotate %104 by %c4_i32_60 dim 0 : vector<32x32xf32>, i32 -> vector<32x32xf32>
    %c9_61 = arith.constant 9 : index
    %c0_62 = arith.constant 0 : index
    %c0_63 = arith.constant 0 : index
    %110 = vector.load %arg1[%c9_61, %c0_62, %c0_63] : memref<12x32x32xf32, #tpu.memory_space<vmem>>, vector<1x32x32xf32>
    %111 = vector.shape_cast %110 : vector<1x32x32xf32> to vector<32x32xf32>
    %112 = arith.mulf %109, %111 : vector<32x32xf32>
    %c28_i32_64 = arith.constant 28 : i32
    %113 = tpu.dynamic_rotate %104 by %c28_i32_64 dim 0 : vector<32x32xf32>, i32 -> vector<32x32xf32>
    %c10 = arith.constant 10 : index
    %c0_65 = arith.constant 0 : index
    %c0_66 = arith.constant 0 : index
    %114 = vector.load %arg1[%c10, %c0_65, %c0_66] : memref<12x32x32xf32, #tpu.memory_space<vmem>>, vector<1x32x32xf32>
    %115 = vector.shape_cast %114 : vector<1x32x32xf32> to vector<32x32xf32>
    %116 = arith.mulf %113, %115 : vector<32x32xf32>
    %c24_i32 = arith.constant 24 : i32
    %117 = tpu.dynamic_rotate %104 by %c24_i32 dim 0 : vector<32x32xf32>, i32 -> vector<32x32xf32>
    %c11 = arith.constant 11 : index
    %c0_67 = arith.constant 0 : index
    %c0_68 = arith.constant 0 : index
    %118 = vector.load %arg1[%c11, %c0_67, %c0_68] : memref<12x32x32xf32, #tpu.memory_space<vmem>>, vector<1x32x32xf32>
    %119 = vector.shape_cast %118 : vector<1x32x32xf32> to vector<32x32xf32>
    %120 = arith.mulf %117, %119 : vector<32x32xf32>
    %121 = tpu.concatenate %108, %112, %104, %116, %120 in 1 : vector<32x32xf32>, vector<32x32xf32>, vector<32x32xf32>, vector<32x32xf32>, vector<32x32xf32> -> vector<32x160xf32>
    %c2_69 = arith.constant 2 : index
    %c0_70 = arith.constant 0 : index
    %c0_71 = arith.constant 0 : index
    %122 = vector.load %arg4[%c2_69, %c0_70, %c0_71] : memref<3x1x128xf32, #tpu.memory_space<vmem>>, vector<1x1x128xf32>
    %123 = vector.shape_cast %122 : vector<1x1x128xf32> to vector<1x128xf32>
    %c2_72 = arith.constant 2 : index
    %c0_73 = arith.constant 0 : index
    %c0_74 = arith.constant 0 : index
    %124 = vector.load %arg2[%c2_72, %c0_73, %c0_74] : memref<3x160x64xf32, #tpu.memory_space<vmem>>, vector<1x160x64xf32>
    %125 = vector.shape_cast %124 : vector<1x160x64xf32> to vector<160x64xf32>
    %cst_75 = arith.constant dense<0.000000e+00> : vector<32x64xf32>
    %126 = tpu.matmul %121, %125, %cst_75 {dimension_numbers = #tpu.dot_dimension_numbers<[1], [0], [0], [1], [0, 0, 1, 1], [], []>} : vector<32x160xf32>, vector<160x64xf32>, vector<32x64xf32> -> vector<32x64xf32>
    %127 = vector.extract_strided_slice %123 {offsets = [0, 0], sizes = [1, 64], strides = [1, 1]} : vector<1x128xf32> to vector<1x64xf32>
    %128 = vector.broadcast %127 : vector<1x64xf32> to vector<32x64xf32>
    %129 = arith.addf %126, %128 : vector<32x64xf32>
    %130 = vector.extract_strided_slice %129 {offsets = [0, 0], sizes = [32, 32], strides = [1, 1]} : vector<32x64xf32> to vector<32x32xf32>
    %131 = vector.extract_strided_slice %129 {offsets = [0, 32], sizes = [32, 32], strides = [1, 1]} : vector<32x64xf32> to vector<32x32xf32>
    %132 = math.tanh %130 : vector<32x32xf32>
    %cst_76 = arith.constant 5.000000e-01 : f32
    %133 = vector.broadcast %cst_76 : f32 to vector<32x32xf32>
    %134 = arith.mulf %133, %131 : vector<32x32xf32>
    %135 = math.tanh %134 : vector<32x32xf32>
    %cst_77 = arith.constant 1.000000e+00 : f32
    %136 = vector.broadcast %cst_77 : f32 to vector<32x32xf32>
    %137 = arith.addf %135, %136 : vector<32x32xf32>
    %cst_78 = arith.constant 5.000000e-01 : f32
    %138 = vector.broadcast %cst_78 : f32 to vector<32x32xf32>
    %139 = arith.mulf %138, %137 : vector<32x32xf32>
    %140 = arith.mulf %132, %139 : vector<32x32xf32>
    %c2_79 = arith.constant 2 : index
    %c0_80 = arith.constant 0 : index
    %c0_81 = arith.constant 0 : index
    %141 = vector.load %arg3[%c2_79, %c0_80, %c0_81] : memref<3x32x64xf32, #tpu.memory_space<vmem>>, vector<1x32x64xf32>
    %142 = vector.shape_cast %141 : vector<1x32x64xf32> to vector<32x64xf32>
    %cst_82 = arith.constant dense<0.000000e+00> : vector<32x64xf32>
    %143 = tpu.matmul %140, %142, %cst_82 {dimension_numbers = #tpu.dot_dimension_numbers<[1], [0], [0], [1], [0, 0, 1, 1], [], []>} : vector<32x32xf32>, vector<32x64xf32>, vector<32x64xf32> -> vector<32x64xf32>
    %144 = vector.extract_strided_slice %123 {offsets = [0, 64], sizes = [1, 64], strides = [1, 1]} : vector<1x128xf32> to vector<1x64xf32>
    %145 = vector.broadcast %144 : vector<1x64xf32> to vector<32x64xf32>
    %146 = arith.addf %143, %145 : vector<32x64xf32>
    %147 = vector.extract_strided_slice %146 {offsets = [0, 32], sizes = [32, 32], strides = [1, 1]} : vector<32x64xf32> to vector<32x32xf32>
    %148 = arith.addf %101, %147 : vector<32x32xf32>
    %149 = arith.mulf %148, %4 : vector<32x32xf32>
    %cst_83 = arith.constant dense<0.000000e+00> : vector<32x8xf32>
    %150 = tpu.matmul %149, %7, %cst_83 {dimension_numbers = #tpu.dot_dimension_numbers<[1], [0], [0], [1], [0, 0, 1, 1], [], []>} : vector<32x32xf32>, vector<32x8xf32>, vector<32x8xf32> -> vector<32x8xf32>
    %151 = vector.broadcast %6 : vector<1x8xf32> to vector<32x8xf32>
    %152 = arith.addf %150, %151 : vector<32x8xf32>
    %153 = vector.broadcast %2 : vector<32x1xf32> to vector<32x8xf32>
    %154 = arith.mulf %152, %153 : vector<32x8xf32>
    %155 = vector.extract_strided_slice %154 {offsets = [0, 0], sizes = [32, 4], strides = [1, 1]} : vector<32x8xf32> to vector<32x4xf32>
    %156 = vector.extract_strided_slice %154 {offsets = [0, 4], sizes = [32, 4], strides = [1, 1]} : vector<32x8xf32> to vector<32x4xf32>
    %157 = math.exp %156 : vector<32x4xf32>
    %158 = arith.mulf %1, %157 : vector<32x4xf32>
    %159 = arith.addf %155, %158 : vector<32x4xf32>
    %160 = vector.broadcast %2 : vector<32x1xf32> to vector<32x4xf32>
    %161 = arith.mulf %159, %160 : vector<32x4xf32>
    %cst_84 = arith.constant 0.000000e+00 : f32
    %162 = vector.broadcast %cst_84 : f32 to vector<32x116xf32>
    %163 = tpu.concatenate %161, %155, %156, %162 in 1 : vector<32x4xf32>, vector<32x4xf32>, vector<32x4xf32>, vector<32x116xf32> -> vector<32x128xf32>
    %c0_85 = arith.constant 0 : index
    %c0_86 = arith.constant 0 : index
    %164 = vector.load %arg6[%c0_85, %c0_86] : memref<32x128xf32, #tpu.memory_space<vmem>>, vector<32x128xf32>
    tpu.vector_store %arg6[%c0_85, %c0_86], %163 {strides = array<i32>} : memref<32x128xf32, #tpu.memory_space<vmem>>, vector<32x128xf32>,
    return
  }
}

</mosaic_0001>

<llo_original>
// kernel: posterior_encoder_pallas.1
$region0: #{posterior_encoder_pallas.1}
  #allocation0 [shape = 'u32[]', space=smem, size = 0x4, offset = 0x4, fixed_abs, tag = 'smem constant byte address 0x4 - core index']
  #allocation1 [shape = 'u32[144,128]{1,0:T(1,128)}', space=vmem, size = 0x12000, scoped, tag = 'internal scratch']
  %s0 = inlined_call_operand.vmem [shape: f32[32,128], index: 0, kind: input, shape index: {}]
  %s1 = inlined_call_operand.vmem [shape: f32[12,32,32], index: 1, kind: input, shape index: {}]
  %s2 = inlined_call_operand.vmem [shape: f32[3,160,64], index: 2, kind: input, shape index: {}]
  %s3 = inlined_call_operand.vmem [shape: f32[3,32,64], index: 3, kind: input, shape index: {}]
  %s4 = inlined_call_operand.vmem [shape: f32[3,1,128], index: 4, kind: input, shape index: {}]
  %s5 = inlined_call_operand.vmem [shape: f32[40,128], index: 5, kind: input, shape index: {}]
  %s6 = inlined_call_operand.vmem [shape: f32[32,128], index: 6, kind: output, shape index: {}]
  %s7 = sld [smem:[#allocation0]]
  $region34: #{posterior_encoder_pallas.1} parent=0
    _
  %s9 = ssub.s32 1, %s7
  %s10 = scalar_select 0, %s9, %s7
  // Predicated region
  $region2: #{posterior_encoder_pallas.1} parent=0 // pred_check
    _
  $region3: #{posterior_encoder_pallas.1} parent=0 // pred_check_branch
    %12 = sbr.rel (0) target = $region5
  $region4: #{posterior_encoder_pallas.1} parent=0 // pred_region
    _
  $region5: #{posterior_encoder_pallas.1} parent=0 // pred_fallthru
    _
  // Predicated region
  $region6: #{posterior_encoder_pallas.1} parent=0 // pred_check
    _
  $region7: #{posterior_encoder_pallas.1} parent=0 // pred_check_branch
    %14 = sbr.rel (0) target = $region9
  $region8: #{posterior_encoder_pallas.1} parent=0 // pred_region
    _
  $region9: #{posterior_encoder_pallas.1} parent=0 // pred_fallthru
    _
  // Predicated region
  $region10: #{posterior_encoder_pallas.1} parent=0 // pred_check
    _
  $region11: #{posterior_encoder_pallas.1} parent=0 // pred_check_branch
    %16 = sbr.rel (0) target = $region13
  $region12: #{posterior_encoder_pallas.1} parent=0 // pred_region
    _
  $region13: #{posterior_encoder_pallas.1} parent=0 // pred_fallthru
    _
  // Predicated region
  $region14: #{posterior_encoder_pallas.1} parent=0 // pred_check
    _
  $region15: #{posterior_encoder_pallas.1} parent=0 // pred_check_branch
    %18 = sbr.rel (0) target = $region17
  $region16: #{posterior_encoder_pallas.1} parent=0 // pred_region
    _
  $region17: #{posterior_encoder_pallas.1} parent=0 // pred_fallthru
    _
  // Predicated region
  $region18: #{posterior_encoder_pallas.1} parent=0 // pred_check
    _
  $region19: #{posterior_encoder_pallas.1} parent=0 // pred_check_branch
    %20 = sbr.rel (0) target = $region21
  $region20: #{posterior_encoder_pallas.1} parent=0 // pred_region
    _
  $region21: #{posterior_encoder_pallas.1} parent=0 // pred_fallthru
    _
  // Predicated region
  $region22: #{posterior_encoder_pallas.1} parent=0 // pred_check
    _
  $region23: #{posterior_encoder_pallas.1} parent=0 // pred_check_branch
    %22 = sbr.rel (0) target = $region25
  $region24: #{posterior_encoder_pallas.1} parent=0 // pred_region
    _
  $region25: #{posterior_encoder_pallas.1} parent=0 // pred_fallthru
    _
  %v23 = vld [vmem:[%s0] sm:$0xff]
  %v24 = vld [vmem:[%s0 + $0x8] sm:$0xff]
  %v25 = vld [vmem:[%s0 + $0x10] sm:$0xff]
  %v26 = vld [vmem:[%s0 + $0x18] sm:$0xff]
  %28 = vset.pattern.permute.xlu0 9
  %29 = vperm.xlu0 %28, %v23
  %v30 = vpop.permute.xlu0 %29
  %33 = vset.pattern.permute.xlu0 9
  %34 = vperm.xlu0 %33, %v24
  %v35 = vpop.permute.xlu0 %34
  %38 = vset.pattern.permute.xlu0 9
  %39 = vperm.xlu0 %38, %v25
  %v40 = vpop.permute.xlu0 %39
  %43 = vset.pattern.permute.xlu0 9
  %44 = vperm.xlu0 %43, %v26
  %v45 = vpop.permute.xlu0 %44
  %v47 = vld [vmem:[%s5] sm:$0x1f]
  %v48 = vld [vmem:[%s5 + $0x5] sm:$0x1]
  %v49 = vld [vmem:[%s5 + $0x8] sm:$0xff]
  %v50 = vld [vmem:[%s5 + $0x10] sm:$0xff]
  %v51 = vld [vmem:[%s5 + $0x18] sm:$0xff]
  %v52 = vld [vmem:[%s5 + $0x20] sm:$0xff]
  %vm53 = vcmask 39936
  %v54 = vsel %vm53, %v23, 0
  %v56 = vsel %vm53, %v24, 0
  %v58 = vsel %vm53, %v25, 0
  %v60 = vsel %vm53, %v26, 0
  %vm62 = vcmask 1044480
  %v64 = vsel %vm62, %v47, 0
  %66 = vmatprep.subr.mxu0 0.0
  %67 = vmatpush1.msra.mxu0 0.0
  %68 = vmatprep.subr.mxu0 0.0
  %69 = vmatpush1.msra.mxu0 0.0
  %70 = vmatprep.subr.mxu0 0.0
  %71 = vmatpush1.msra.mxu0 0.0
  %72 = vmatprep.subr.mxu0 0.0
  %73 = vmatpush1.msra.mxu0 0.0
  %74 = vmatprep.subr.mxu0 0.0
  %75 = vmatpush1.msra.mxu0 0.0
  %76 = vmatprep.subr.mxu0 0.0
  %77 = vmatpush1.msra.mxu0 0.0
  %78 = vmatprep.subr.mxu0 0.0
  %79 = vmatpush1.msra.mxu0 0.0
  %80 = vmatprep.subr.mxu0 0.0
  %81 = vmatpush1.msra.mxu0 0.0
  %82 = vmatprep.subr.mxu0 0.0
  %83 = vmatpush1.msra.mxu0 0.0
  %84 = vmatprep.subr.mxu0 0.0
  %85 = vmatpush1.msra.mxu0 0.0
  %86 = vmatprep.subr.mxu0 0.0
  %87 = vmatpush1.msra.mxu0 0.0
  %88 = vmatprep.subr.mxu0 0.0
  %89 = vmatpush1.msra.mxu0 0.0
  %90 = vmatprep.subr.mxu0 0.0
  %91 = vmatpush1.msra.mxu0 0.0
  %92 = vmatprep.subr.mxu0 0.0
  %93 = vmatpush1.msra.mxu0 0.0
  %94 = vmatprep.subr.mxu0 0.0
  %95 = vmatpush1.msra.mxu0 0.0
  %96 = vmatprep.subr.mxu0 0.0
  %97 = vmatpush1.msra.mxu0 %v64
  %98 = vmatprep.subr.mxu0 0.0
  %99 = vmatpush2.msra.mxu0 0.0
  %100 = vmatprep.subr.mxu0 0.0
  %101 = vmatpush2.msra.mxu0 0.0
  %102 = vmatprep.subr.mxu0 0.0
  %103 = vmatpush2.msra.mxu0 0.0
  %104 = vmatprep.subr.mxu0 0.0
  %105 = vmatpush2.msra.mxu0 0.0
  %106 = vmatprep.subr.mxu0 0.0
  %107 = vmatpush2.msra.mxu0 0.0
  %108 = vmatprep.subr.mxu0 0.0
  %109 = vmatpush2.msra.mxu0 0.0
  %110 = vmatprep.subr.mxu0 0.0
  %111 = vmatpush2.msra.mxu0 0.0
  %112 = vmatprep.subr.mxu0 0.0
  %113 = vmatpush2.msra.mxu0 0.0
  %114 = vmatprep.subr.mxu0 0.0
  %115 = vmatpush2.msra.mxu0 0.0
  %116 = vmatprep.subr.mxu0 0.0
  %117 = vmatpush2.msra.mxu0 0.0
  %118 = vmatprep.subr.mxu0 0.0
  %119 = vmatpush2.msra.mxu0 0.0
  %120 = vmatprep.subr.mxu0 0.0
  %121 = vmatpush2.msra.mxu0 0.0
  %122 = vmatprep.subr.mxu0 0.0
  %123 = vmatpush2.msra.mxu0 0.0
  %124 = vmatprep.subr.mxu0 0.0
  %125 = vmatpush2.msra.mxu0 0.0
  %126 = vmatprep.subr.mxu0 0.0
  %127 = vmatpush2.msra.mxu0 0.0
  %128 = vmatprep.subr.mxu0 0.0
  %129 = vmatpush2.msra.mxu0 0.0
  %130 = vmatprep.mubr.f32.mxu0 0.0
  %131 = vmatmul.mubr.f32.gmra.mxu0 %v54
  %v132 = vpop.f32.mrf.mxu0
  %v133 = vadd.f32 0.0, %v132
  %v134 = vpop.f32.mrf.mxu0
  %135 = vmatprep.mubr.f32.mxu0 0.0
  %136 = vmatmul.mubr.f32.gmra.mxu0 %v56
  %v137 = vpop.f32.mrf.mxu0
  %v138 = vadd.f32 0.0, %v137
  %v139 = vpop.f32.mrf.mxu0
  %140 = vmatprep.mubr.f32.mxu0 0.0
  %141 = vmatmul.mubr.f32.gmra.mxu0 %v58
  %v142 = vpop.f32.mrf.mxu0
  %v143 = vadd.f32 0.0, %v142
  %v144 = vpop.f32.mrf.mxu0
  %145 = vmatprep.mubr.f32.mxu0 0.0
  %146 = vmatmul.mubr.f32.gmra.mxu0 %v60
  %v147 = vpop.f32.mrf.mxu0
  %v148 = vadd.f32 0.0, %v147
  %v149 = vpop.f32.mrf.mxu0
  %150 = vdwg.mxu0
  %v151 = vmul.f32 %v133, %v30
  %v152 = vmul.f32 %v138, %v35
  %v153 = vmul.f32 %v143, %v40
  %v154 = vmul.f32 %v148, %v45
  %v155 = vrot.slane %v151, 6
  %v156 = vrot.slane %v152, 6
  %v157 = vrot.slane %v153, 6
  %v158 = vrot.slane %v154, 6
  %v159 = vlaneseq
  %v160 = vshrl.u32 %v159, 7
  %vm161 = vcmp.lt.s32.totalorder %v160, 2
  %v162 = vsel %vm161, %v157, %v158
  %v163 = vsel %vm161, %v156, %v157
  %v164 = vsel %vm161, %v155, %v156
  %v165 = vsel %vm161, %v158, %v155
  %v166 = vld [vmem:[%s1] sm:$0xff]
  %v167 = vld [vmem:[%s1 + $0x8] sm:$0xff]
  %v168 = vld [vmem:[%s1 + $0x10] sm:$0xff]
  %v169 = vld [vmem:[%s1 + $0x18] sm:$0xff]
  %v170 = vmul.f32 %v165, %v166
  %v171 = vmul.f32 %v164, %v167
  %v172 = vmul.f32 %v163, %v168
  %v173 = vmul.f32 %v162, %v169
  %v174 = vrot.slane %v151, 7
  %v175 = vrot.slane %v152, 7
  %v176 = vrot.slane %v153, 7
  %v177 = vrot.slane %v154, 7
  %vm178 = vcmp.lt.s32.totalorder %v160, 1
  %v179 = vsel %vm178, %v176, %v177
  %v180 = vsel %vm178, %v175, %v176
  %v181 = vsel %vm178, %v174, %v175
  %v182 = vsel %vm178, %v177, %v174
  %s183 = scalar_lea.vmem %s1, 32
  %v184 = vld [vmem:[%s183] sm:$0xff]
  %v185 = vld [vmem:[%s183 + $0x8] sm:$0xff]
  %v186 = vld [vmem:[%s183 + $0x10] sm:$0xff]
  %v187 = vld [vmem:[%s183 + $0x18] sm:$0xff]
  %v188 = vmul.f32 %v182, %v184
  %v189 = vmul.f32 %v181, %v185
  %v190 = vmul.f32 %v180, %v186
  %v191 = vmul.f32 %v179, %v187
  %v192 = vrot.slane %v151, 1
  %v193 = vrot.slane %v152, 1
  %v194 = vrot.slane %v153, 1
  %v195 = vrot.slane %v154, 1
  %vm196 = vcmp.lt.s32.totalorder %v160, 7
  %v197 = vsel %vm196, %v194, %v195
  %v198 = vsel %vm196, %v193, %v194
  %v199 = vsel %vm196, %v192, %v193
  %v200 = vsel %vm196, %v195, %v192
  %s201 = scalar_lea.vmem %s1, 64
  %v202 = vld [vmem:[%s201] sm:$0xff]
  %v203 = vld [vmem:[%s201 + $0x8] sm:$0xff]
  %v204 = vld [vmem:[%s201 + $0x10] sm:$0xff]
  %v205 = vld [vmem:[%s201 + $0x18] sm:$0xff]
  %v206 = vmul.f32 %v199, %v202
  %v207 = vmul.f32 %v198, %v203
  %v208 = vmul.f32 %v197, %v204
  %v209 = vmul.f32 %v200, %v205
  %v210 = vrot.slane %v151, 2
  %v211 = vrot.slane %v152, 2
  %v212 = vrot.slane %v153, 2
  %v213 = vrot.slane %v154, 2
  %vm214 = vcmp.lt.s32.totalorder %v160, 6
  %v215 = vsel %vm214, %v212, %v213
  %v216 = vsel %vm214, %v211, %v212
  %v217 = vsel %vm214, %v210, %v211
  %v218 = vsel %vm214, %v213, %v210
  %s219 = scalar_lea.vmem %s1, 96
  %v220 = vld [vmem:[%s219] sm:$0xff]
  %v221 = vld [vmem:[%s219 + $0x8] sm:$0xff]
  %v222 = vld [vmem:[%s219 + $0x10] sm:$0xff]
  %v223 = vld [vmem:[%s219 + $0x18] sm:$0xff]
  %v224 = vmul.f32 %v217, %v220
  %v225 = vmul.f32 %v216, %v221
  %v226 = vmul.f32 %v215, %v222
  %v227 = vmul.f32 %v218, %v223
  %232 = vrot.lane.b32.xlu0 %v188, 32
  %v233 = vpop.permute.xlu0 %232
  %234 = vrot.lane.b32.xlu0 %v189, 32
  %v235 = vpop.permute.xlu0 %234
  %236 = vrot.lane.b32.xlu0 %v190, 32
  %v237 = vpop.permute.xlu0 %236
  %238 = vrot.lane.b32.xlu0 %v191, 32
  %v239 = vpop.permute.xlu0 %238
  %248 = vrot.lane.b32.xlu0 %v151, 64
  %v249 = vpop.permute.xlu0 %248
  %250 = vrot.lane.b32.xlu0 %v152, 64
  %v251 = vpop.permute.xlu0 %250
  %252 = vrot.lane.b32.xlu0 %v153, 64
  %v253 = vpop.permute.xlu0 %252
  %254 = vrot.lane.b32.xlu0 %v154, 64
  %v255 = vpop.permute.xlu0 %254
  %264 = vrot.lane.b32.xlu0 %v206, 96
  %v265 = vpop.permute.xlu0 %264
  %266 = vrot.lane.b32.xlu0 %v207, 96
  %v267 = vpop.permute.xlu0 %266
  %268 = vrot.lane.b32.xlu0 %v208, 96
  %v269 = vpop.permute.xlu0 %268
  %270 = vrot.lane.b32.xlu0 %v209, 96
  %v271 = vpop.permute.xlu0 %270
  %vm276 = vcmask 261120
  %v277 = vsel %vm276, %v170, %v233
  %v278 = vsel %vm276, %v171, %v235
  %v279 = vsel %vm276, %v172, %v237
  %v280 = vsel %vm276, %v173, %v239
  %vm281 = vcmask 523264
  %v282 = vsel %vm281, %v277, %v249
  %v283 = vsel %vm281, %v278, %v251
  %v284 = vsel %vm281, %v279, %v253
  %v285 = vsel %vm281, %v280, %v255
  %vm286 = vcmask 785408
  %v287 = vsel %vm286, %v282, %v265
  %v288 = vsel %vm286, %v283, %v267
  %v289 = vsel %vm286, %v284, %v269
  %v290 = vsel %vm286, %v285, %v271
  %v291 = vld [vmem:[%s4] sm:$0x1]
  %v292 = vld [vmem:[%s2] sm:$0xff]
  %v293 = vld [vmem:[%s2 + $0x8] sm:$0xff]
  %v294 = vld [vmem:[%s2 + $0x10] sm:$0xff]
  %v295 = vld [vmem:[%s2 + $0x18] sm:$0xff]
  %v296 = vld [vmem:[%s2 + $0x20] sm:$0xff]
  %v297 = vld [vmem:[%s2 + $0x28] sm:$0xff]
  %v298 = vld [vmem:[%s2 + $0x30] sm:$0xff]
  %v299 = vld [vmem:[%s2 + $0x38] sm:$0xff]
  %v300 = vld [vmem:[%s2 + $0x40] sm:$0xff]
  %v301 = vld [vmem:[%s2 + $0x48] sm:$0xff]
  %v302 = vld [vmem:[%s2 + $0x50] sm:$0xff]
  %v303 = vld [vmem:[%s2 + $0x58] sm:$0xff]
  %v304 = vld [vmem:[%s2 + $0x60] sm:$0xff]
  %v305 = vld [vmem:[%s2 + $0x68] sm:$0xff]
  %v306 = vld [vmem:[%s2 + $0x70] sm:$0xff]
  %v307 = vld [vmem:[%s2 + $0x78] sm:$0xff]
  %v308 = vld [vmem:[%s2 + $0x80] sm:$0xff]
  %v309 = vld [vmem:[%s2 + $0x88] sm:$0xff]
  %v310 = vld [vmem:[%s2 + $0x90] sm:$0xff]
  %v311 = vld [vmem:[%s2 + $0x98] sm:$0xff]
  %v313 = vlaneseq
  %v314 = vshrl.u32 %v313, 7
  %v315 = vsub.s32 0, %v314
  %v316 = vrot.slane %v291, %v315
  %v319 = vsel %vm276, %v224, 0
  %v322 = vsel %vm276, %v225, 0
  %v325 = vsel %vm276, %v226, 0
  %v328 = vsel %vm276, %v227, 0
  %330 = vmatprep.subr.mxu0 0.0
  %331 = vmatpush1.msra.mxu0 %v307
  %332 = vmatprep.subr.mxu0 0.0
  %333 = vmatpush1.msra.mxu0 %v306
  %334 = vmatprep.subr.mxu0 0.0
  %335 = vmatpush1.msra.mxu0 %v305
  %336 = vmatprep.subr.mxu0 0.0
  %337 = vmatpush1.msra.mxu0 %v304
  %338 = vmatprep.subr.mxu0 0.0
  %339 = vmatpush1.msra.mxu0 %v303
  %340 = vmatprep.subr.mxu0 0.0
  %341 = vmatpush1.msra.mxu0 %v302
  %342 = vmatprep.subr.mxu0 0.0
  %343 = vmatpush1.msra.mxu0 %v301
  %344 = vmatprep.subr.mxu0 0.0
  %345 = vmatpush1.msra.mxu0 %v300
  %346 = vmatprep.subr.mxu0 0.0
  %347 = vmatpush1.msra.mxu0 %v299
  %348 = vmatprep.subr.mxu0 0.0
  %349 = vmatpush1.msra.mxu0 %v298
  %350 = vmatprep.subr.mxu0 0.0
  %351 = vmatpush1.msra.mxu0 %v297
  %352 = vmatprep.subr.mxu0 0.0
  %353 = vmatpush1.msra.mxu0 %v296
  %354 = vmatprep.subr.mxu0 0.0
  %355 = vmatpush1.msra.mxu0 %v295
  %356 = vmatprep.subr.mxu0 0.0
  %357 = vmatpush1.msra.mxu0 %v294
  %358 = vmatprep.subr.mxu0 0.0
  %359 = vmatpush1.msra.mxu0 %v293
  %360 = vmatprep.subr.mxu0 0.0
  %361 = vmatpush1.msra.mxu0 %v292
  %362 = vmatprep.subr.mxu0 0.0
  %363 = vmatpush2.msra.mxu0 0.0
  %364 = vmatprep.subr.mxu0 0.0
  %365 = vmatpush2.msra.mxu0 0.0
  %366 = vmatprep.subr.mxu0 0.0
  %367 = vmatpush2.msra.mxu0 0.0
  %368 = vmatprep.subr.mxu0 0.0
  %369 = vmatpush2.msra.mxu0 0.0
  %370 = vmatprep.subr.mxu0 0.0
  %371 = vmatpush2.msra.mxu0 0.0
  %372 = vmatprep.subr.mxu0 0.0
  %373 = vmatpush2.msra.mxu0 0.0
  %374 = vmatprep.subr.mxu0 0.0
  %375 = vmatpush2.msra.mxu0 0.0
  %376 = vmatprep.subr.mxu0 0.0
  %377 = vmatpush2.msra.mxu0 0.0
  %378 = vmatprep.subr.mxu0 0.0
  %379 = vmatpush2.msra.mxu0 0.0
  %380 = vmatprep.subr.mxu0 0.0
  %381 = vmatpush2.msra.mxu0 0.0
  %382 = vmatprep.subr.mxu0 0.0
  %383 = vmatpush2.msra.mxu0 0.0
  %384 = vmatprep.subr.mxu0 0.0
  %385 = vmatpush2.msra.mxu0 0.0
  %386 = vmatprep.subr.mxu0 0.0
  %387 = vmatpush2.msra.mxu0 %v311
  %388 = vmatprep.subr.mxu0 0.0
  %389 = vmatpush2.msra.mxu0 %v310
  %390 = vmatprep.subr.mxu0 0.0
  %391 = vmatpush2.msra.mxu0 %v309
  %392 = vmatprep.subr.mxu0 0.0
  %393 = vmatpush2.msra.mxu0 %v308
  %394 = vmatprep.mubr.f32.mxu0 %v319
  %395 = vmatmul.mubr.f32.gmra.mxu0 %v287
  %v396 = vpop.f32.mrf.mxu0
  %v397 = vadd.f32 %v316, %v396
  %v398 = vpop.f32.mrf.mxu0
  %399 = vmatprep.mubr.f32.mxu0 %v322
  %400 = vmatmul.mubr.f32.gmra.mxu0 %v288
  %v401 = vpop.f32.mrf.mxu0
  %v402 = vadd.f32 %v316, %v401
  %v403 = vpop.f32.mrf.mxu0
  %404 = vmatprep.mubr.f32.mxu0 %v325
  %405 = vmatmul.mubr.f32.gmra.mxu0 %v289
  %v406 = vpop.f32.mrf.mxu0
  %v407 = vadd.f32 %v316, %v406
  %v408 = vpop.f32.mrf.mxu0
  %409 = vmatprep.mubr.f32.mxu0 %v328
  %410 = vmatmul.mubr.f32.gmra.mxu0 %v290
  %v411 = vpop.f32.mrf.mxu0
  %v412 = vadd.f32 %v316, %v411
  %v413 = vpop.f32.mrf.mxu0
  %414 = vdwg.mxu0
  %v415 = vtanh.pop %v397
  %v416 = vtanh.pop %v402
  %v417 = vtanh.pop %v407
  %v418 = vtanh.pop %v412
  %v419 = vmul.f32 %v397, 0.5
  %v420 = vmul.f32 %v402, 0.5
  %v421 = vmul.f32 %v407, 0.5
  %v422 = vmul.f32 %v412, 0.5
  %v423 = vtanh.pop %v419
  %v424 = vtanh.pop %v420
  %v425 = vtanh.pop %v421
  %v426 = vtanh.pop %v422
  %v427 = vadd.f32 %v423, 1.0
  %v428 = vadd.f32 %v424, 1.0
  %v429 = vadd.f32 %v425, 1.0
  %v430 = vadd.f32 %v426, 1.0
  %v431 = vmul.f32 %v427, 0.5
  %v432 = vmul.f32 %v428, 0.5
  %v433 = vmul.f32 %v429, 0.5
  %v434 = vmul.f32 %v430, 0.5
  %439 = vrot.lane.b32.xlu0 %v431, 96
  %v440 = vpop.permute.xlu0 %439
  %441 = vrot.lane.b32.xlu0 %v432, 96
  %v442 = vpop.permute.xlu0 %441
  %443 = vrot.lane.b32.xlu0 %v433, 96
  %v444 = vpop.permute.xlu0 %443
  %445 = vrot.lane.b32.xlu0 %v434, 96
  %v446 = vpop.permute.xlu0 %445
  %v451 = vmul.f32 %v415, %v440
  %v452 = vmul.f32 %v416, %v442
  %v453 = vmul.f32 %v417, %v444
  %v454 = vmul.f32 %v418, %v446
  %v455 = vld [vmem:[%s3] sm:$0xff]
  %v456 = vld [vmem:[%s3 + $0x8] sm:$0xff]
  %v457 = vld [vmem:[%s3 + $0x10] sm:$0xff]
  %v458 = vld [vmem:[%s3 + $0x18] sm:$0xff]
  %459 = vrot.lane.b32.xlu0 %v316, 64
  %v460 = vpop.permute.xlu0 %459
  %v463 = vsel %vm276, %v451, 0
  %v466 = vsel %vm276, %v452, 0
  %v469 = vsel %vm276, %v453, 0
  %v472 = vsel %vm276, %v454, 0
  %474 = vmatprep.subr.mxu0 0.0
  %475 = vmatpush1.msra.mxu0 0.0
  %476 = vmatprep.subr.mxu0 0.0
  %477 = vmatpush1.msra.mxu0 0.0
  %478 = vmatprep.subr.mxu0 0.0
  %479 = vmatpush1.msra.mxu0 0.0
  %480 = vmatprep.subr.mxu0 0.0
  %481 = vmatpush1.msra.mxu0 0.0
  %482 = vmatprep.subr.mxu0 0.0
  %483 = vmatpush1.msra.mxu0 0.0
  %484 = vmatprep.subr.mxu0 0.0
  %485 = vmatpush1.msra.mxu0 0.0
  %486 = vmatprep.subr.mxu0 0.0
  %487 = vmatpush1.msra.mxu0 0.0
  %488 = vmatprep.subr.mxu0 0.0
  %489 = vmatpush1.msra.mxu0 0.0
  %490 = vmatprep.subr.mxu0 0.0
  %491 = vmatpush1.msra.mxu0 0.0
  %492 = vmatprep.subr.mxu0 0.0
  %493 = vmatpush1.msra.mxu0 0.0
  %494 = vmatprep.subr.mxu0 0.0
  %495 = vmatpush1.msra.mxu0 0.0
  %496 = vmatprep.subr.mxu0 0.0
  %497 = vmatpush1.msra.mxu0 0.0
  %498 = vmatprep.subr.mxu0 0.0
  %499 = vmatpush1.msra.mxu0 %v458
  %500 = vmatprep.subr.mxu0 0.0
  %501 = vmatpush1.msra.mxu0 %v457
  %502 = vmatprep.subr.mxu0 0.0
  %503 = vmatpush1.msra.mxu0 %v456
  %504 = vmatprep.subr.mxu0 0.0
  %505 = vmatpush1.msra.mxu0 %v455
  %506 = vmatprep.subr.mxu0 0.0
  %507 = vmatpush2.msra.mxu0 0.0
  %508 = vmatprep.subr.mxu0 0.0
  %509 = vmatpush2.msra.mxu0 0.0
  %510 = vmatprep.subr.mxu0 0.0
  %511 = vmatpush2.msra.mxu0 0.0
  %512 = vmatprep.subr.mxu0 0.0
  %513 = vmatpush2.msra.mxu0 0.0
  %514 = vmatprep.subr.mxu0 0.0
  %515 = vmatpush2.msra.mxu0 0.0
  %516 = vmatprep.subr.mxu0 0.0
  %517 = vmatpush2.msra.mxu0 0.0
  %518 = vmatprep.subr.mxu0 0.0
  %519 = vmatpush2.msra.mxu0 0.0
  %520 = vmatprep.subr.mxu0 0.0
  %521 = vmatpush2.msra.mxu0 0.0
  %522 = vmatprep.subr.mxu0 0.0
  %523 = vmatpush2.msra.mxu0 0.0
  %524 = vmatprep.subr.mxu0 0.0
  %525 = vmatpush2.msra.mxu0 0.0
  %526 = vmatprep.subr.mxu0 0.0
  %527 = vmatpush2.msra.mxu0 0.0
  %528 = vmatprep.subr.mxu0 0.0
  %529 = vmatpush2.msra.mxu0 0.0
  %530 = vmatprep.subr.mxu0 0.0
  %531 = vmatpush2.msra.mxu0 0.0
  %532 = vmatprep.subr.mxu0 0.0
  %533 = vmatpush2.msra.mxu0 0.0
  %534 = vmatprep.subr.mxu0 0.0
  %535 = vmatpush2.msra.mxu0 0.0
  %536 = vmatprep.subr.mxu0 0.0
  %537 = vmatpush2.msra.mxu0 0.0
  %538 = vmatprep.mubr.f32.mxu0 0.0
  %539 = vmatmul.mubr.f32.gmra.mxu0 %v463
  %v540 = vpop.f32.mrf.mxu0
  %v541 = vadd.f32 %v460, %v540
  %v542 = vpop.f32.mrf.mxu0
  %543 = vmatprep.mubr.f32.mxu0 0.0
  %544 = vmatmul.mubr.f32.gmra.mxu0 %v466
  %v545 = vpop.f32.mrf.mxu0
  %v546 = vadd.f32 %v460, %v545
  %v547 = vpop.f32.mrf.mxu0
  %548 = vmatprep.mubr.f32.mxu0 0.0
  %549 = vmatmul.mubr.f32.gmra.mxu0 %v469
  %v550 = vpop.f32.mrf.mxu0
  %v551 = vadd.f32 %v460, %v550
  %v552 = vpop.f32.mrf.mxu0
  %553 = vmatprep.mubr.f32.mxu0 0.0
  %554 = vmatmul.mubr.f32.gmra.mxu0 %v472
  %v555 = vpop.f32.mrf.mxu0
  %v556 = vadd.f32 %v460, %v555
  %v557 = vpop.f32.mrf.mxu0
  %558 = vdwg.mxu0
  %v559 = vadd.f32 %v541, 0.0
  %v560 = vadd.f32 %v546, 0.0
  %v561 = vadd.f32 %v551, 0.0
  %v562 = vadd.f32 %v556, 0.0
  %v563 = vadd.f32 %v151, %v541
  %v564 = vadd.f32 %v152, %v546
  %v565 = vadd.f32 %v153, %v551
  %v566 = vadd.f32 %v154, %v556
  %v567 = vmul.f32 %v563, %v30
  %v568 = vmul.f32 %v564, %v35
  %v569 = vmul.f32 %v565, %v40
  %v570 = vmul.f32 %v566, %v45
  %v571 = vrot.slane %v567, 4
  %v572 = vrot.slane %v568, 4
  %v573 = vrot.slane %v569, 4
  %v574 = vrot.slane %v570, 4
  %vm575 = vcmp.lt.s32.totalorder %v160, 4
  %v576 = vsel %vm575, %v573, %v574
  %v577 = vsel %vm575, %v572, %v573
  %v578 = vsel %vm575, %v571, %v572
  %v579 = vsel %vm575, %v574, %v571
  %s580 = scalar_lea.vmem %s1, 128
  %v581 = vld [vmem:[%s580] sm:$0xff]
  %v582 = vld [vmem:[%s580 + $0x8] sm:$0xff]
  %v583 = vld [vmem:[%s580 + $0x10] sm:$0xff]
  %v584 = vld [vmem:[%s580 + $0x18] sm:$0xff]
  %v585 = vmul.f32 %v579, %v581
  %v586 = vmul.f32 %v578, %v582
  %v587 = vmul.f32 %v577, %v583
  %v588 = vmul.f32 %v576, %v584
  %v589 = vrot.slane %v567, 6
  %v590 = vrot.slane %v568, 6
  %v591 = vrot.slane %v569, 6
  %v592 = vrot.slane %v570, 6
  %v593 = vsel %vm161, %v591, %v592
  %v594 = vsel %vm161, %v590, %v591
  %v595 = vsel %vm161, %v589, %v590
  %v596 = vsel %vm161, %v592, %v589
  %s597 = scalar_lea.vmem %s1, 160
  %v598 = vld [vmem:[%s597] sm:$0xff]
  %v599 = vld [vmem:[%s597 + $0x8] sm:$0xff]
  %v600 = vld [vmem:[%s597 + $0x10] sm:$0xff]
  %v601 = vld [vmem:[%s597 + $0x18] sm:$0xff]
  %v602 = vmul.f32 %v596, %v598
  %v603 = vmul.f32 %v595, %v599
  %v604 = vmul.f32 %v594, %v600
  %v605 = vmul.f32 %v593, %v601
  %v606 = vrot.slane %v567, 2
  %v607 = vrot.slane %v568, 2
  %v608 = vrot.slane %v569, 2
  %v609 = vrot.slane %v570, 2
  %v610 = vsel %vm214, %v608, %v609
  %v611 = vsel %vm214, %v607, %v608
  %v612 = vsel %vm214, %v606, %v607
  %v613 = vsel %vm214, %v609, %v606
  %s614 = scalar_lea.vmem %s1, 192
  %v615 = vld [vmem:[%s614] sm:$0xff]
  %v616 = vld [vmem:[%s614 + $0x8] sm:$0xff]
  %v617 = vld [vmem:[%s614 + $0x10] sm:$0xff]
  %v618 = vld [vmem:[%s614 + $0x18] sm:$0xff]
  %v619 = vmul.f32 %v612, %v615
  %v620 = vmul.f32 %v611, %v616
  %v621 = vmul.f32 %v610, %v617
  %v622 = vmul.f32 %v613, %v618
  %s623 = scalar_lea.vmem %s1, 224
  %v624 = vld [vmem:[%s623] sm:$0xff]
  %v625 = vld [vmem:[%s623 + $0x8] sm:$0xff]
  %v626 = vld [vmem:[%s623 + $0x10] sm:$0xff]
  %v627 = vld [vmem:[%s623 + $0x18] sm:$0xff]
  %v628 = vmul.f32 %v578, %v624
  %v629 = vmul.f32 %v577, %v625
  %v630 = vmul.f32 %v576, %v626
  %v631 = vmul.f32 %v579, %v627
  %636 = vrot.lane.b32.xlu0 %v602, 32
  %v637 = vpop.permute.xlu0 %636
  %638 = vrot.lane.b32.xlu0 %v603, 32
  %v639 = vpop.permute.xlu0 %638
  %640 = vrot.lane.b32.xlu0 %v604, 32
  %v641 = vpop.permute.xlu0 %640
  %642 = vrot.lane.b32.xlu0 %v605, 32
  %v643 = vpop.permute.xlu0 %642
  %652 = vrot.lane.b32.xlu0 %v567, 64
  %v653 = vpop.permute.xlu0 %652
  %654 = vrot.lane.b32.xlu0 %v568, 64
  %v655 = vpop.permute.xlu0 %654
  %656 = vrot.lane.b32.xlu0 %v569, 64
  %v657 = vpop.permute.xlu0 %656
  %658 = vrot.lane.b32.xlu0 %v570, 64
  %v659 = vpop.permute.xlu0 %658
  %668 = vrot.lane.b32.xlu0 %v619, 96
  %v669 = vpop.permute.xlu0 %668
  %670 = vrot.lane.b32.xlu0 %v620, 96
  %v671 = vpop.permute.xlu0 %670
  %672 = vrot.lane.b32.xlu0 %v621, 96
  %v673 = vpop.permute.xlu0 %672
  %674 = vrot.lane.b32.xlu0 %v622, 96
  %v675 = vpop.permute.xlu0 %674
  %v680 = vsel %vm276, %v585, %v637
  %v681 = vsel %vm276, %v586, %v639
  %v682 = vsel %vm276, %v587, %v641
  %v683 = vsel %vm276, %v588, %v643
  %v684 = vsel %vm281, %v680, %v653
  %v685 = vsel %vm281, %v681, %v655
  %v686 = vsel %vm281, %v682, %v657
  %v687 = vsel %vm281, %v683, %v659
  %v688 = vsel %vm286, %v684, %v669
  %v689 = vsel %vm286, %v685, %v671
  %v690 = vsel %vm286, %v686, %v673
  %v691 = vsel %vm286, %v687, %v675
  %s692 = scalar_lea.vmem %s4, 1
  %v693 = vld [vmem:[%s692] sm:$0x1]
  %s694 = scalar_lea.vmem %s2, 160
  %v695 = vld [vmem:[%s694] sm:$0xff]
  %v696 = vld [vmem:[%s694 + $0x8] sm:$0xff]
  %v697 = vld [vmem:[%s694 + $0x10] sm:$0xff]
  %v698 = vld [vmem:[%s694 + $0x18] sm:$0xff]
  %v699 = vld [vmem:[%s694 + $0x20] sm:$0xff]
  %v700 = vld [vmem:[%s694 + $0x28] sm:$0xff]
  %v701 = vld [vmem:[%s694 + $0x30] sm:$0xff]
  %v702 = vld [vmem:[%s694 + $0x38] sm:$0xff]
  %v703 = vld [vmem:[%s694 + $0x40] sm:$0xff]
  %v704 = vld [vmem:[%s694 + $0x48] sm:$0xff]
  %v705 = vld [vmem:[%s694 + $0x50] sm:$0xff]
  %v706 = vld [vmem:[%s694 + $0x58] sm:$0xff]
  %v707 = vld [vmem:[%s694 + $0x60] sm:$0xff]
  %v708 = vld [vmem:[%s694 + $0x68] sm:$0xff]
  %v709 = vld [vmem:[%s694 + $0x70] sm:$0xff]
  %v710 = vld [vmem:[%s694 + $0x78] sm:$0xff]
  %v711 = vld [vmem:[%s694 + $0x80] sm:$0xff]
  %v712 = vld [vmem:[%s694 + $0x88] sm:$0xff]
  %v713 = vld [vmem:[%s694 + $0x90] sm:$0xff]
  %v714 = vld [vmem:[%s694 + $0x98] sm:$0xff]
  %v716 = vlaneseq
  %v717 = vshrl.u32 %v716, 7
  %v718 = vsub.s32 0, %v717
  %v719 = vrot.slane %v693, %v718
  %v722 = vsel %vm276, %v628, 0
  %v725 = vsel %vm276, %v629, 0
  %v728 = vsel %vm276, %v630, 0
  %v731 = vsel %vm276, %v631, 0
  %733 = vmatprep.subr.mxu0 0.0
  %734 = vmatpush1.msra.mxu0 %v710
  %735 = vmatprep.subr.mxu0 0.0
  %736 = vmatpush1.msra.mxu0 %v709
  %737 = vmatprep.subr.mxu0 0.0
  %738 = vmatpush1.msra.mxu0 %v708
  %739 = vmatprep.subr.mxu0 0.0
  %740 = vmatpush1.msra.mxu0 %v707
  %741 = vmatprep.subr.mxu0 0.0
  %742 = vmatpush1.msra.mxu0 %v706
  %743 = vmatprep.subr.mxu0 0.0
  %744 = vmatpush1.msra.mxu0 %v705
  %745 = vmatprep.subr.mxu0 0.0
  %746 = vmatpush1.msra.mxu0 %v704
  %747 = vmatprep.subr.mxu0 0.0
  %748 = vmatpush1.msra.mxu0 %v703
  %749 = vmatprep.subr.mxu0 0.0
  %750 = vmatpush1.msra.mxu0 %v702
  %751 = vmatprep.subr.mxu0 0.0
  %752 = vmatpush1.msra.mxu0 %v701
  %753 = vmatprep.subr.mxu0 0.0
  %754 = vmatpush1.msra.mxu0 %v700
  %755 = vmatprep.subr.mxu0 0.0
  %756 = vmatpush1.msra.mxu0 %v699
  %757 = vmatprep.subr.mxu0 0.0
  %758 = vmatpush1.msra.mxu0 %v698
  %759 = vmatprep.subr.mxu0 0.0
  %760 = vmatpush1.msra.mxu0 %v697
  %761 = vmatprep.subr.mxu0 0.0
  %762 = vmatpush1.msra.mxu0 %v696
  %763 = vmatprep.subr.mxu0 0.0
  %764 = vmatpush1.msra.mxu0 %v695
  %765 = vmatprep.subr.mxu0 0.0
  %766 = vmatpush2.msra.mxu0 0.0
  %767 = vmatprep.subr.mxu0 0.0
  %768 = vmatpush2.msra.mxu0 0.0
  %769 = vmatprep.subr.mxu0 0.0
  %770 = vmatpush2.msra.mxu0 0.0
  %771 = vmatprep.subr.mxu0 0.0
  %772 = vmatpush2.msra.mxu0 0.0
  %773 = vmatprep.subr.mxu0 0.0
  %774 = vmatpush2.msra.mxu0 0.0
  %775 = vmatprep.subr.mxu0 0.0
  %776 = vmatpush2.msra.mxu0 0.0
  %777 = vmatprep.subr.mxu0 0.0
  %778 = vmatpush2.msra.mxu0 0.0
  %779 = vmatprep.subr.mxu0 0.0
  %780 = vmatpush2.msra.mxu0 0.0
  %781 = vmatprep.subr.mxu0 0.0
  %782 = vmatpush2.msra.mxu0 0.0
  %783 = vmatprep.subr.mxu0 0.0
  %784 = vmatpush2.msra.mxu0 0.0
  %785 = vmatprep.subr.mxu0 0.0
  %786 = vmatpush2.msra.mxu0 0.0
  %787 = vmatprep.subr.mxu0 0.0
  %788 = vmatpush2.msra.mxu0 0.0
  %789 = vmatprep.subr.mxu0 0.0
  %790 = vmatpush2.msra.mxu0 %v714
  %791 = vmatprep.subr.mxu0 0.0
  %792 = vmatpush2.msra.mxu0 %v713
  %793 = vmatprep.subr.mxu0 0.0
  %794 = vmatpush2.msra.mxu0 %v712
  %795 = vmatprep.subr.mxu0 0.0
  %796 = vmatpush2.msra.mxu0 %v711
  %797 = vmatprep.mubr.f32.mxu0 %v722
  %798 = vmatmul.mubr.f32.gmra.mxu0 %v688
  %v799 = vpop.f32.mrf.mxu0
  %v800 = vadd.f32 %v719, %v799
  %v801 = vpop.f32.mrf.mxu0
  %802 = vmatprep.mubr.f32.mxu0 %v725
  %803 = vmatmul.mubr.f32.gmra.mxu0 %v689
  %v804 = vpop.f32.mrf.mxu0
  %v805 = vadd.f32 %v719, %v804
  %v806 = vpop.f32.mrf.mxu0
  %807 = vmatprep.mubr.f32.mxu0 %v728
  %808 = vmatmul.mubr.f32.gmra.mxu0 %v690
  %v809 = vpop.f32.mrf.mxu0
  %v810 = vadd.f32 %v719, %v809
  %v811 = vpop.f32.mrf.mxu0
  %812 = vmatprep.mubr.f32.mxu0 %v731
  %813 = vmatmul.mubr.f32.gmra.mxu0 %v691
  %v814 = vpop.f32.mrf.mxu0
  %v815 = vadd.f32 %v719, %v814
  %v816 = vpop.f32.mrf.mxu0
  %817 = vdwg.mxu0
  %v818 = vtanh.pop %v800
  %v819 = vtanh.pop %v805
  %v820 = vtanh.pop %v810
  %v821 = vtanh.pop %v815
  %v822 = vmul.f32 %v800, 0.5
  %v823 = vmul.f32 %v805, 0.5
  %v824 = vmul.f32 %v810, 0.5
  %v825 = vmul.f32 %v815, 0.5
  %v826 = vtanh.pop %v822
  %v827 = vtanh.pop %v823
  %v828 = vtanh.pop %v824
  %v829 = vtanh.pop %v825
  %v830 = vadd.f32 %v826, 1.0
  %v831 = vadd.f32 %v827, 1.0
  %v832 = vadd.f32 %v828, 1.0
  %v833 = vadd.f32 %v829, 1.0
  %v834 = vmul.f32 %v830, 0.5
  %v835 = vmul.f32 %v831, 0.5
  %v836 = vmul.f32 %v832, 0.5
  %v837 = vmul.f32 %v833, 0.5
  %842 = vrot.lane.b32.xlu0 %v834, 96
  %v843 = vpop.permute.xlu0 %842
  %844 = vrot.lane.b32.xlu0 %v835, 96
  %v845 = vpop.permute.xlu0 %844
  %846 = vrot.lane.b32.xlu0 %v836, 96
  %v847 = vpop.permute.xlu0 %846
  %848 = vrot.lane.b32.xlu0 %v837, 96
  %v849 = vpop.permute.xlu0 %848
  %v854 = vmul.f32 %v818, %v843
  %v855 = vmul.f32 %v819, %v845
  %v856 = vmul.f32 %v820, %v847
  %v857 = vmul.f32 %v821, %v849
  %s858 = scalar_lea.vmem %s3, 32
  %v859 = vld [vmem:[%s858] sm:$0xff]
  %v860 = vld [vmem:[%s858 + $0x8] sm:$0xff]
  %v861 = vld [vmem:[%s858 + $0x10] sm:$0xff]
  %v862 = vld [vmem:[%s858 + $0x18] sm:$0xff]
  %863 = vrot.lane.b32.xlu0 %v719, 64
  %v864 = vpop.permute.xlu0 %863
  %v867 = vsel %vm276, %v854, 0
  %v870 = vsel %vm276, %v855, 0
  %v873 = vsel %vm276, %v856, 0
  %v876 = vsel %vm276, %v857, 0
  %878 = vmatprep.subr.mxu0 0.0
  %879 = vmatpush1.msra.mxu0 0.0
  %880 = vmatprep.subr.mxu0 0.0
  %881 = vmatpush1.msra.mxu0 0.0
  %882 = vmatprep.subr.mxu0 0.0
  %883 = vmatpush1.msra.mxu0 0.0
  %884 = vmatprep.subr.mxu0 0.0
  %885 = vmatpush1.msra.mxu0 0.0
  %886 = vmatprep.subr.mxu0 0.0
  %887 = vmatpush1.msra.mxu0 0.0
  %888 = vmatprep.subr.mxu0 0.0
  %889 = vmatpush1.msra.mxu0 0.0
  %890 = vmatprep.subr.mxu0 0.0
  %891 = vmatpush1.msra.mxu0 0.0
  %892 = vmatprep.subr.mxu0 0.0
  %893 = vmatpush1.msra.mxu0 0.0
  %894 = vmatprep.subr.mxu0 0.0
  %895 = vmatpush1.msra.mxu0 0.0
  %896 = vmatprep.subr.mxu0 0.0
  %897 = vmatpush1.msra.mxu0 0.0
  %898 = vmatprep.subr.mxu0 0.0
  %899 = vmatpush1.msra.mxu0 0.0
  %900 = vmatprep.subr.mxu0 0.0
  %901 = vmatpush1.msra.mxu0 0.0
  %902 = vmatprep.subr.mxu0 0.0
  %903 = vmatpush1.msra.mxu0 %v862
  %904 = vmatprep.subr.mxu0 0.0
  %905 = vmatpush1.msra.mxu0 %v861
  %906 = vmatprep.subr.mxu0 0.0
  %907 = vmatpush1.msra.mxu0 %v860
  %908 = vmatprep.subr.mxu0 0.0
  %909 = vmatpush1.msra.mxu0 %v859
  %910 = vmatprep.subr.mxu0 0.0
  %911 = vmatpush2.msra.mxu0 0.0
  %912 = vmatprep.subr.mxu0 0.0
  %913 = vmatpush2.msra.mxu0 0.0
  %914 = vmatprep.subr.mxu0 0.0
  %915 = vmatpush2.msra.mxu0 0.0
  %916 = vmatprep.subr.mxu0 0.0
  %917 = vmatpush2.msra.mxu0 0.0
  %918 = vmatprep.subr.mxu0 0.0
  %919 = vmatpush2.msra.mxu0 0.0
  %920 = vmatprep.subr.mxu0 0.0
  %921 = vmatpush2.msra.mxu0 0.0
  %922 = vmatprep.subr.mxu0 0.0
  %923 = vmatpush2.msra.mxu0 0.0
  %924 = vmatprep.subr.mxu0 0.0
  %925 = vmatpush2.msra.mxu0 0.0
  %926 = vmatprep.subr.mxu0 0.0
  %927 = vmatpush2.msra.mxu0 0.0
  %928 = vmatprep.subr.mxu0 0.0
  %929 = vmatpush2.msra.mxu0 0.0
  %930 = vmatprep.subr.mxu0 0.0
  %931 = vmatpush2.msra.mxu0 0.0
  %932 = vmatprep.subr.mxu0 0.0
  %933 = vmatpush2.msra.mxu0 0.0
  %934 = vmatprep.subr.mxu0 0.0
  %935 = vmatpush2.msra.mxu0 0.0
  %936 = vmatprep.subr.mxu0 0.0
  %937 = vmatpush2.msra.mxu0 0.0
  %938 = vmatprep.subr.mxu0 0.0
  %939 = vmatpush2.msra.mxu0 0.0
  %940 = vmatprep.subr.mxu0 0.0
  %941 = vmatpush2.msra.mxu0 0.0
  %942 = vmatprep.mubr.f32.mxu0 0.0
  %943 = vmatmul.mubr.f32.gmra.mxu0 %v867
  %v944 = vpop.f32.mrf.mxu0
  %v945 = vadd.f32 %v864, %v944
  %v946 = vpop.f32.mrf.mxu0
  %947 = vmatprep.mubr.f32.mxu0 0.0
  %948 = vmatmul.mubr.f32.gmra.mxu0 %v870
  %v949 = vpop.f32.mrf.mxu0
  %v950 = vadd.f32 %v864, %v949
  %v951 = vpop.f32.mrf.mxu0
  %952 = vmatprep.mubr.f32.mxu0 0.0
  %953 = vmatmul.mubr.f32.gmra.mxu0 %v873
  %v954 = vpop.f32.mrf.mxu0
  %v955 = vadd.f32 %v864, %v954
  %v956 = vpop.f32.mrf.mxu0
  %957 = vmatprep.mubr.f32.mxu0 0.0
  %958 = vmatmul.mubr.f32.gmra.mxu0 %v876
  %v959 = vpop.f32.mrf.mxu0
  %v960 = vadd.f32 %v864, %v959
  %v961 = vpop.f32.mrf.mxu0
  %962 = vdwg.mxu0
  %v963 = vadd.f32 %v559, %v945
  %v964 = vadd.f32 %v560, %v950
  %v965 = vadd.f32 %v561, %v955
  %v966 = vadd.f32 %v562, %v960
  %v967 = vadd.f32 %v567, %v945
  %v968 = vadd.f32 %v568, %v950
  %v969 = vadd.f32 %v569, %v955
  %v970 = vadd.f32 %v570, %v960
  %v971 = vmul.f32 %v967, %v30
  %v972 = vmul.f32 %v968, %v35
  %v973 = vmul.f32 %v969, %v40
  %v974 = vmul.f32 %v970, %v45
  %s975 = scalar_lea.vmem %s1, 256
  %v976 = vld [vmem:[%s975] sm:$0xff]
  %v977 = vld [vmem:[%s975 + $0x8] sm:$0xff]
  %v978 = vld [vmem:[%s975 + $0x10] sm:$0xff]
  %v979 = vld [vmem:[%s975 + $0x18] sm:$0xff]
  %v980 = vmul.f32 %v974, %v976
  %v981 = vmul.f32 %v971, %v977
  %v982 = vmul.f32 %v972, %v978
  %v983 = vmul.f32 %v973, %v979
  %v984 = vrot.slane %v971, 4
  %v985 = vrot.slane %v972, 4
  %v986 = vrot.slane %v973, 4
  %v987 = vrot.slane %v974, 4
  %v988 = vsel %vm575, %v986, %v987
  %v989 = vsel %vm575, %v985, %v986
  %v990 = vsel %vm575, %v984, %v985
  %v991 = vsel %vm575, %v987, %v984
  %s992 = scalar_lea.vmem %s1, 288
  %v993 = vld [vmem:[%s992] sm:$0xff]
  %v994 = vld [vmem:[%s992 + $0x8] sm:$0xff]
  %v995 = vld [vmem:[%s992 + $0x10] sm:$0xff]
  %v996 = vld [vmem:[%s992 + $0x18] sm:$0xff]
  %v997 = vmul.f32 %v991, %v993
  %v998 = vmul.f32 %v990, %v994
  %v999 = vmul.f32 %v989, %v995
  %v1000 = vmul.f32 %v988, %v996
  %s1001 = scalar_lea.vmem %s1, 320
  %v1002 = vld [vmem:[%s1001] sm:$0xff]
  %v1003 = vld [vmem:[%s1001 + $0x8] sm:$0xff]
  %v1004 = vld [vmem:[%s1001 + $0x10] sm:$0xff]
  %v1005 = vld [vmem:[%s1001 + $0x18] sm:$0xff]
  %v1006 = vmul.f32 %v990, %v1002
  %v1007 = vmul.f32 %v989, %v1003
  %v1008 = vmul.f32 %v988, %v1004
  %v1009 = vmul.f32 %v991, %v1005
  %s1010 = scalar_lea.vmem %s1, 352
  %v1011 = vld [vmem:[%s1010] sm:$0xff]
  %v1012 = vld [vmem:[%s1010 + $0x8] sm:$0xff]
  %v1013 = vld [vmem:[%s1010 + $0x10] sm:$0xff]
  %v1014 = vld [vmem:[%s1010 + $0x18] sm:$0xff]
  %v1015 = vmul.f32 %v972, %v1011
  %v1016 = vmul.f32 %v973, %v1012
  %v1017 = vmul.f32 %v974, %v1013
  %v1018 = vmul.f32 %v971, %v1014
  %1023 = vrot.lane.b32.xlu0 %v997, 32
  %v1024 = vpop.permute.xlu0 %1023
  %1025 = vrot.lane.b32.xlu0 %v998, 32
  %v1026 = vpop.permute.xlu0 %1025
  %1027 = vrot.lane.b32.xlu0 %v999, 32
  %v1028 = vpop.permute.xlu0 %1027
  %1029 = vrot.lane.b32.xlu0 %v1000, 32
  %v1030 = vpop.permute.xlu0 %1029
  %1039 = vrot.lane.b32.xlu0 %v971, 64
  %v1040 = vpop.permute.xlu0 %1039
  %1041 = vrot.lane.b32.xlu0 %v972, 64
  %v1042 = vpop.permute.xlu0 %1041
  %1043 = vrot.lane.b32.xlu0 %v973, 64
  %v1044 = vpop.permute.xlu0 %1043
  %1045 = vrot.lane.b32.xlu0 %v974, 64
  %v1046 = vpop.permute.xlu0 %1045
  %1055 = vrot.lane.b32.xlu0 %v1006, 96
  %v1056 = vpop.permute.xlu0 %1055
  %1057 = vrot.lane.b32.xlu0 %v1007, 96
  %v1058 = vpop.permute.xlu0 %1057
  %1059 = vrot.lane.b32.xlu0 %v1008, 96
  %v1060 = vpop.permute.xlu0 %1059
  %1061 = vrot.lane.b32.xlu0 %v1009, 96
  %v1062 = vpop.permute.xlu0 %1061
  %v1067 = vsel %vm276, %v980, %v1024
  %v1068 = vsel %vm276, %v981, %v1026
  %v1069 = vsel %vm276, %v982, %v1028
  %v1070 = vsel %vm276, %v983, %v1030
  %v1071 = vsel %vm281, %v1067, %v1040
  %v1072 = vsel %vm281, %v1068, %v1042
  %v1073 = vsel %vm281, %v1069, %v1044
  %v1074 = vsel %vm281, %v1070, %v1046
  %v1075 = vsel %vm286, %v1071, %v1056
  %v1076 = vsel %vm286, %v1072, %v1058
  %v1077 = vsel %vm286, %v1073, %v1060
  %v1078 = vsel %vm286, %v1074, %v1062
  %s1079 = scalar_lea.vmem %s4, 2
  %v1080 = vld [vmem:[%s1079] sm:$0x1]
  %s1081 = scalar_lea.vmem %s2, 320
  %v1082 = vld [vmem:[%s1081] sm:$0xff]
  %v1083 = vld [vmem:[%s1081 + $0x8] sm:$0xff]
  %v1084 = vld [vmem:[%s1081 + $0x10] sm:$0xff]
  %v1085 = vld [vmem:[%s1081 + $0x18] sm:$0xff]
  %v1086 = vld [vmem:[%s1081 + $0x20] sm:$0xff]
  %v1087 = vld [vmem:[%s1081 + $0x28] sm:$0xff]
  %v1088 = vld [vmem:[%s1081 + $0x30] sm:$0xff]
  %v1089 = vld [vmem:[%s1081 + $0x38] sm:$0xff]
  %v1090 = vld [vmem:[%s1081 + $0x40] sm:$0xff]
  %v1091 = vld [vmem:[%s1081 + $0x48] sm:$0xff]
  %v1092 = vld [vmem:[%s1081 + $0x50] sm:$0xff]
  %v1093 = vld [vmem:[%s1081 + $0x58] sm:$0xff]
  %v1094 = vld [vmem:[%s1081 + $0x60] sm:$0xff]
  %v1095 = vld [vmem:[%s1081 + $0x68] sm:$0xff]
  %v1096 = vld [vmem:[%s1081 + $0x70] sm:$0xff]
  %v1097 = vld [vmem:[%s1081 + $0x78] sm:$0xff]
  %v1098 = vld [vmem:[%s1081 + $0x80] sm:$0xff]
  %v1099 = vld [vmem:[%s1081 + $0x88] sm:$0xff]
  %v1100 = vld [vmem:[%s1081 + $0x90] sm:$0xff]
  %v1101 = vld [vmem:[%s1081 + $0x98] sm:$0xff]
  %v1103 = vlaneseq
  %v1104 = vshrl.u32 %v1103, 7
  %v1105 = vsub.s32 0, %v1104
  %v1106 = vrot.slane %v1080, %v1105
  %v1109 = vsel %vm276, %v1015, 0
  %v1112 = vsel %vm276, %v1016, 0
  %v1115 = vsel %vm276, %v1017, 0
  %v1118 = vsel %vm276, %v1018, 0
  %1120 = vmatprep.subr.mxu0 0.0
  %1121 = vmatpush1.msra.mxu0 %v1097
  %1122 = vmatprep.subr.mxu0 0.0
  %1123 = vmatpush1.msra.mxu0 %v1096
  %1124 = vmatprep.subr.mxu0 0.0
  %1125 = vmatpush1.msra.mxu0 %v1095
  %1126 = vmatprep.subr.mxu0 0.0
  %1127 = vmatpush1.msra.mxu0 %v1094
  %1128 = vmatprep.subr.mxu0 0.0
  %1129 = vmatpush1.msra.mxu0 %v1093
  %1130 = vmatprep.subr.mxu0 0.0
  %1131 = vmatpush1.msra.mxu0 %v1092
  %1132 = vmatprep.subr.mxu0 0.0
  %1133 = vmatpush1.msra.mxu0 %v1091
  %1134 = vmatprep.subr.mxu0 0.0
  %1135 = vmatpush1.msra.mxu0 %v1090
  %1136 = vmatprep.subr.mxu0 0.0
  %1137 = vmatpush1.msra.mxu0 %v1089
  %1138 = vmatprep.subr.mxu0 0.0
  %1139 = vmatpush1.msra.mxu0 %v1088
  %1140 = vmatprep.subr.mxu0 0.0
  %1141 = vmatpush1.msra.mxu0 %v1087
  %1142 = vmatprep.subr.mxu0 0.0
  %1143 = vmatpush1.msra.mxu0 %v1086
  %1144 = vmatprep.subr.mxu0 0.0
  %1145 = vmatpush1.msra.mxu0 %v1085
  %1146 = vmatprep.subr.mxu0 0.0
  %1147 = vmatpush1.msra.mxu0 %v1084
  %1148 = vmatprep.subr.mxu0 0.0
  %1149 = vmatpush1.msra.mxu0 %v1083
  %1150 = vmatprep.subr.mxu0 0.0
  %1151 = vmatpush1.msra.mxu0 %v1082
  %1152 = vmatprep.subr.mxu0 0.0
  %1153 = vmatpush2.msra.mxu0 0.0
  %1154 = vmatprep.subr.mxu0 0.0
  %1155 = vmatpush2.msra.mxu0 0.0
  %1156 = vmatprep.subr.mxu0 0.0
  %1157 = vmatpush2.msra.mxu0 0.0
  %1158 = vmatprep.subr.mxu0 0.0
  %1159 = vmatpush2.msra.mxu0 0.0
  %1160 = vmatprep.subr.mxu0 0.0
  %1161 = vmatpush2.msra.mxu0 0.0
  %1162 = vmatprep.subr.mxu0 0.0
  %1163 = vmatpush2.msra.mxu0 0.0
  %1164 = vmatprep.subr.mxu0 0.0
  %1165 = vmatpush2.msra.mxu0 0.0
  %1166 = vmatprep.subr.mxu0 0.0
  %1167 = vmatpush2.msra.mxu0 0.0
  %1168 = vmatprep.subr.mxu0 0.0
  %1169 = vmatpush2.msra.mxu0 0.0
  %1170 = vmatprep.subr.mxu0 0.0
  %1171 = vmatpush2.msra.mxu0 0.0
  %1172 = vmatprep.subr.mxu0 0.0
  %1173 = vmatpush2.msra.mxu0 0.0
  %1174 = vmatprep.subr.mxu0 0.0
  %1175 = vmatpush2.msra.mxu0 0.0
  %1176 = vmatprep.subr.mxu0 0.0
  %1177 = vmatpush2.msra.mxu0 %v1101
  %1178 = vmatprep.subr.mxu0 0.0
  %1179 = vmatpush2.msra.mxu0 %v1100
  %1180 = vmatprep.subr.mxu0 0.0
  %1181 = vmatpush2.msra.mxu0 %v1099
  %1182 = vmatprep.subr.mxu0 0.0
  %1183 = vmatpush2.msra.mxu0 %v1098
  %1184 = vmatprep.mubr.f32.mxu0 %v1109
  %1185 = vmatmul.mubr.f32.gmra.mxu0 %v1075
  %v1186 = vpop.f32.mrf.mxu0
  %v1187 = vadd.f32 %v1106, %v1186
  %v1188 = vpop.f32.mrf.mxu0
  %1189 = vmatprep.mubr.f32.mxu0 %v1112
  %1190 = vmatmul.mubr.f32.gmra.mxu0 %v1076
  %v1191 = vpop.f32.mrf.mxu0
  %v1192 = vadd.f32 %v1106, %v1191
  %v1193 = vpop.f32.mrf.mxu0
  %1194 = vmatprep.mubr.f32.mxu0 %v1115
  %1195 = vmatmul.mubr.f32.gmra.mxu0 %v1077
  %v1196 = vpop.f32.mrf.mxu0
  %v1197 = vadd.f32 %v1106, %v1196
  %v1198 = vpop.f32.mrf.mxu0
  %1199 = vmatprep.mubr.f32.mxu0 %v1118
  %1200 = vmatmul.mubr.f32.gmra.mxu0 %v1078
  %v1201 = vpop.f32.mrf.mxu0
  %v1202 = vadd.f32 %v1106, %v1201
  %v1203 = vpop.f32.mrf.mxu0
  %1204 = vdwg.mxu0
  %v1205 = vtanh.pop %v1187
  %v1206 = vtanh.pop %v1192
  %v1207 = vtanh.pop %v1197
  %v1208 = vtanh.pop %v1202
  %v1209 = vmul.f32 %v1187, 0.5
  %v1210 = vmul.f32 %v1192, 0.5
  %v1211 = vmul.f32 %v1197, 0.5
  %v1212 = vmul.f32 %v1202, 0.5
  %v1213 = vtanh.pop %v1209
  %v1214 = vtanh.pop %v1210
  %v1215 = vtanh.pop %v1211
  %v1216 = vtanh.pop %v1212
  %v1217 = vadd.f32 %v1213, 1.0
  %v1218 = vadd.f32 %v1214, 1.0
  %v1219 = vadd.f32 %v1215, 1.0
  %v1220 = vadd.f32 %v1216, 1.0
  %v1221 = vmul.f32 %v1217, 0.5
  %v1222 = vmul.f32 %v1218, 0.5
  %v1223 = vmul.f32 %v1219, 0.5
  %v1224 = vmul.f32 %v1220, 0.5
  %1229 = vrot.lane.b32.xlu0 %v1221, 96
  %v1230 = vpop.permute.xlu0 %1229
  %1231 = vrot.lane.b32.xlu0 %v1222, 96
  %v1232 = vpop.permute.xlu0 %1231
  %1233 = vrot.lane.b32.xlu0 %v1223, 96
  %v1234 = vpop.permute.xlu0 %1233
  %1235 = vrot.lane.b32.xlu0 %v1224, 96
  %v1236 = vpop.permute.xlu0 %1235
  %v1241 = vmul.f32 %v1205, %v1230
  %v1242 = vmul.f32 %v1206, %v1232
  %v1243 = vmul.f32 %v1207, %v1234
  %v1244 = vmul.f32 %v1208, %v1236
  %s1245 = scalar_lea.vmem %s3, 64
  %v1246 = vld [vmem:[%s1245] sm:$0xff]
  %v1247 = vld [vmem:[%s1245 + $0x8] sm:$0xff]
  %v1248 = vld [vmem:[%s1245 + $0x10] sm:$0xff]
  %v1249 = vld [vmem:[%s1245 + $0x18] sm:$0xff]
  %1250 = vrot.lane.b32.xlu0 %v1106, 64
  %v1251 = vpop.permute.xlu0 %1250
  %v1254 = vsel %vm276, %v1241, 0
  %v1257 = vsel %vm276, %v1242, 0
  %v1260 = vsel %vm276, %v1243, 0
  %v1263 = vsel %vm276, %v1244, 0
  %1265 = vmatprep.subr.mxu0 0.0
  %1266 = vmatpush1.msra.mxu0 0.0
  %1267 = vmatprep.subr.mxu0 0.0
  %1268 = vmatpush1.msra.mxu0 0.0
  %1269 = vmatprep.subr.mxu0 0.0
  %1270 = vmatpush1.msra.mxu0 0.0
  %1271 = vmatprep.subr.mxu0 0.0
  %1272 = vmatpush1.msra.mxu0 0.0
  %1273 = vmatprep.subr.mxu0 0.0
  %1274 = vmatpush1.msra.mxu0 0.0
  %1275 = vmatprep.subr.mxu0 0.0
  %1276 = vmatpush1.msra.mxu0 0.0
  %1277 = vmatprep.subr.mxu0 0.0
  %1278 = vmatpush1.msra.mxu0 0.0
  %1279 = vmatprep.subr.mxu0 0.0
  %1280 = vmatpush1.msra.mxu0 0.0
  %1281 = vmatprep.subr.mxu0 0.0
  %1282 = vmatpush1.msra.mxu0 0.0
  %1283 = vmatprep.subr.mxu0 0.0
  %1284 = vmatpush1.msra.mxu0 0.0
  %1285 = vmatprep.subr.mxu0 0.0
  %1286 = vmatpush1.msra.mxu0 0.0
  %1287 = vmatprep.subr.mxu0 0.0
  %1288 = vmatpush1.msra.mxu0 0.0
  %1289 = vmatprep.subr.mxu0 0.0
  %1290 = vmatpush1.msra.mxu0 %v1249
  %1291 = vmatprep.subr.mxu0 0.0
  %1292 = vmatpush1.msra.mxu0 %v1248
  %1293 = vmatprep.subr.mxu0 0.0
  %1294 = vmatpush1.msra.mxu0 %v1247
  %1295 = vmatprep.subr.mxu0 0.0
  %1296 = vmatpush1.msra.mxu0 %v1246
  %1297 = vmatprep.subr.mxu0 0.0
  %1298 = vmatpush2.msra.mxu0 0.0
  %1299 = vmatprep.subr.mxu0 0.0
  %1300 = vmatpush2.msra.mxu0 0.0
  %1301 = vmatprep.subr.mxu0 0.0
  %1302 = vmatpush2.msra.mxu0 0.0
  %1303 = vmatprep.subr.mxu0 0.0
  %1304 = vmatpush2.msra.mxu0 0.0
  %1305 = vmatprep.subr.mxu0 0.0
  %1306 = vmatpush2.msra.mxu0 0.0
  %1307 = vmatprep.subr.mxu0 0.0
  %1308 = vmatpush2.msra.mxu0 0.0
  %1309 = vmatprep.subr.mxu0 0.0
  %1310 = vmatpush2.msra.mxu0 0.0
  %1311 = vmatprep.subr.mxu0 0.0
  %1312 = vmatpush2.msra.mxu0 0.0
  %1313 = vmatprep.subr.mxu0 0.0
  %1314 = vmatpush2.msra.mxu0 0.0
  %1315 = vmatprep.subr.mxu0 0.0
  %1316 = vmatpush2.msra.mxu0 0.0
  %1317 = vmatprep.subr.mxu0 0.0
  %1318 = vmatpush2.msra.mxu0 0.0
  %1319 = vmatprep.subr.mxu0 0.0
  %1320 = vmatpush2.msra.mxu0 0.0
  %1321 = vmatprep.subr.mxu0 0.0
  %1322 = vmatpush2.msra.mxu0 0.0
  %1323 = vmatprep.subr.mxu0 0.0
  %1324 = vmatpush2.msra.mxu0 0.0
  %1325 = vmatprep.subr.mxu0 0.0
  %1326 = vmatpush2.msra.mxu0 0.0
  %1327 = vmatprep.subr.mxu0 0.0
  %1328 = vmatpush2.msra.mxu0 0.0
  %1329 = vmatprep.mubr.f32.mxu0 0.0
  %1330 = vmatmul.mubr.f32.gmra.mxu0 %v1254
  %v1331 = vpop.f32.mrf.mxu0
  %v1332 = vadd.f32 %v1251, %v1331
  %v1333 = vpop.f32.mrf.mxu0
  %1334 = vmatprep.mubr.f32.mxu0 0.0
  %1335 = vmatmul.mubr.f32.gmra.mxu0 %v1257
  %v1336 = vpop.f32.mrf.mxu0
  %v1337 = vadd.f32 %v1251, %v1336
  %v1338 = vpop.f32.mrf.mxu0
  %1339 = vmatprep.mubr.f32.mxu0 0.0
  %1340 = vmatmul.mubr.f32.gmra.mxu0 %v1260
  %v1341 = vpop.f32.mrf.mxu0
  %v1342 = vadd.f32 %v1251, %v1341
  %v1343 = vpop.f32.mrf.mxu0
  %1344 = vmatprep.mubr.f32.mxu0 0.0
  %1345 = vmatmul.mubr.f32.gmra.mxu0 %v1263
  %v1346 = vpop.f32.mrf.mxu0
  %v1347 = vadd.f32 %v1251, %v1346
  %v1348 = vpop.f32.mrf.mxu0
  %1349 = vdwg.mxu0
  %v1350 = vadd.f32 %v963, %v1332
  %v1351 = vadd.f32 %v964, %v1337
  %v1352 = vadd.f32 %v965, %v1342
  %v1353 = vadd.f32 %v966, %v1347
  %v1354 = vmul.f32 %v1350, %v30
  %v1355 = vmul.f32 %v1351, %v35
  %v1356 = vmul.f32 %v1352, %v40
  %v1357 = vmul.f32 %v1353, %v45
  %v1358 = vlaneseq
  %v1359 = vshrl.u32 %v1358, 7
  %v1360 = vsub.s32 0, %v1359
  %v1361 = vrot.slane %v48, %v1360
  %1366 = vrot.lane.b32.xlu0 %v1354, 96
  %v1367 = vpop.permute.xlu0 %1366
  %1368 = vrot.lane.b32.xlu0 %v1355, 96
  %v1369 = vpop.permute.xlu0 %1368
  %1370 = vrot.lane.b32.xlu0 %v1356, 96
  %v1371 = vpop.permute.xlu0 %1370
  %1372 = vrot.lane.b32.xlu0 %v1357, 96
  %v1373 = vpop.permute.xlu0 %1372
  %v1374 = vsel %vm276, %v1367, 0
  %v1376 = vsel %vm276, %v1369, 0
  %v1378 = vsel %vm276, %v1371, 0
  %v1380 = vsel %vm276, %v1373, 0
  %1382 = vmatprep.subr.mxu0 0.0
  %1383 = vmatpush1.msra.mxu0 0.0
  %1384 = vmatprep.subr.mxu0 0.0
  %1385 = vmatpush1.msra.mxu0 0.0
  %1386 = vmatprep.subr.mxu0 0.0
  %1387 = vmatpush1.msra.mxu0 0.0
  %1388 = vmatprep.subr.mxu0 0.0
  %1389 = vmatpush1.msra.mxu0 0.0
  %1390 = vmatprep.subr.mxu0 0.0
  %1391 = vmatpush1.msra.mxu0 0.0
  %1392 = vmatprep.subr.mxu0 0.0
  %1393 = vmatpush1.msra.mxu0 0.0
  %1394 = vmatprep.subr.mxu0 0.0
  %1395 = vmatpush1.msra.mxu0 0.0
  %1396 = vmatprep.subr.mxu0 0.0
  %1397 = vmatpush1.msra.mxu0 0.0
  %1398 = vmatprep.subr.mxu0 0.0
  %1399 = vmatpush1.msra.mxu0 0.0
  %1400 = vmatprep.subr.mxu0 0.0
  %1401 = vmatpush1.msra.mxu0 0.0
  %1402 = vmatprep.subr.mxu0 0.0
  %1403 = vmatpush1.msra.mxu0 0.0
  %1404 = vmatprep.subr.mxu0 0.0
  %1405 = vmatpush1.msra.mxu0 0.0
  %1406 = vmatprep.subr.mxu0 0.0
  %1407 = vmatpush1.msra.mxu0 %v52
  %1408 = vmatprep.subr.mxu0 0.0
  %1409 = vmatpush1.msra.mxu0 %v51
  %1410 = vmatprep.subr.mxu0 0.0
  %1411 = vmatpush1.msra.mxu0 %v50
  %1412 = vmatprep.subr.mxu0 0.0
  %1413 = vmatpush1.msra.mxu0 %v49
  %1414 = vmatprep.subr.mxu0 0.0
  %1415 = vmatpush2.msra.mxu0 0.0
  %1416 = vmatprep.subr.mxu0 0.0
  %1417 = vmatpush2.msra.mxu0 0.0
  %1418 = vmatprep.subr.mxu0 0.0
  %1419 = vmatpush2.msra.mxu0 0.0
  %1420 = vmatprep.subr.mxu0 0.0
  %1421 = vmatpush2.msra.mxu0 0.0
  %1422 = vmatprep.subr.mxu0 0.0
  %1423 = vmatpush2.msra.mxu0 0.0
  %1424 = vmatprep.subr.mxu0 0.0
  %1425 = vmatpush2.msra.mxu0 0.0
  %1426 = vmatprep.subr.mxu0 0.0
  %1427 = vmatpush2.msra.mxu0 0.0
  %1428 = vmatprep.subr.mxu0 0.0
  %1429 = vmatpush2.msra.mxu0 0.0
  %1430 = vmatprep.subr.mxu0 0.0
  %1431 = vmatpush2.msra.mxu0 0.0
  %1432 = vmatprep.subr.mxu0 0.0
  %1433 = vmatpush2.msra.mxu0 0.0
  %1434 = vmatprep.subr.mxu0 0.0
  %1435 = vmatpush2.msra.mxu0 0.0
  %1436 = vmatprep.subr.mxu0 0.0
  %1437 = vmatpush2.msra.mxu0 0.0
  %1438 = vmatprep.subr.mxu0 0.0
  %1439 = vmatpush2.msra.mxu0 0.0
  %1440 = vmatprep.subr.mxu0 0.0
  %1441 = vmatpush2.msra.mxu0 0.0
  %1442 = vmatprep.subr.mxu0 0.0
  %1443 = vmatpush2.msra.mxu0 0.0
  %1444 = vmatprep.subr.mxu0 0.0
  %1445 = vmatpush2.msra.mxu0 0.0
  %1446 = vmatprep.mubr.f32.mxu0 0.0
  %1447 = vmatmul.mubr.f32.gmra.mxu0 %v1374
  %v1448 = vpop.f32.mrf.mxu0
  %v1449 = vadd.f32 %v1361, %v1448
  %v1450 = vpop.f32.mrf.mxu0
  %1451 = vmatprep.mubr.f32.mxu0 0.0
  %1452 = vmatmul.mubr.f32.gmra.mxu0 %v1376
  %v1453 = vpop.f32.mrf.mxu0
  %v1454 = vadd.f32 %v1361, %v1453
  %v1455 = vpop.f32.mrf.mxu0
  %1456 = vmatprep.mubr.f32.mxu0 0.0
  %1457 = vmatmul.mubr.f32.gmra.mxu0 %v1378
  %v1458 = vpop.f32.mrf.mxu0
  %v1459 = vadd.f32 %v1361, %v1458
  %v1460 = vpop.f32.mrf.mxu0
  %1461 = vmatprep.mubr.f32.mxu0 0.0
  %1462 = vmatmul.mubr.f32.gmra.mxu0 %v1380
  %v1463 = vpop.f32.mrf.mxu0
  %v1464 = vadd.f32 %v1361, %v1463
  %v1465 = vpop.f32.mrf.mxu0
  %1466 = vdwg.mxu0
  %v1467 = vmul.f32 %v1449, %v30
  %v1468 = vmul.f32 %v1454, %v35
  %v1469 = vmul.f32 %v1459, %v40
  %v1470 = vmul.f32 %v1464, %v45
  %v1471 = vmul.f32 %v1467, 1.442695
  %v1472 = vpow.pop %v1471
  %v1473 = vmul.f32 %v1468, 1.442695
  %v1474 = vpow.pop %v1473
  %v1475 = vmul.f32 %v1469, 1.442695
  %v1476 = vpow.pop %v1475
  %v1477 = vmul.f32 %v1470, 1.442695
  %v1478 = vpow.pop %v1477
  %1483 = vrot.lane.b32.xlu0 %v1472, 1
  %v1484 = vpop.permute.xlu0 %1483
  %1485 = vrot.lane.b32.xlu0 %v1474, 1
  %v1486 = vpop.permute.xlu0 %1485
  %1487 = vrot.lane.b32.xlu0 %v1476, 1
  %v1488 = vpop.permute.xlu0 %1487
  %1489 = vrot.lane.b32.xlu0 %v1478, 1
  %v1490 = vpop.permute.xlu0 %1489
  %v1495 = vmul.f32 %v23, %v1484
  %v1496 = vmul.f32 %v24, %v1486
  %v1497 = vmul.f32 %v25, %v1488
  %v1498 = vmul.f32 %v26, %v1490
  %1503 = vrot.lane.b32.xlu0 %v1495, 123
  %v1504 = vpop.permute.xlu0 %1503
  %1505 = vrot.lane.b32.xlu0 %v1496, 123
  %v1506 = vpop.permute.xlu0 %1505
  %1507 = vrot.lane.b32.xlu0 %v1497, 123
  %v1508 = vpop.permute.xlu0 %1507
  %1509 = vrot.lane.b32.xlu0 %v1498, 123
  %v1510 = vpop.permute.xlu0 %1509
  %v1515 = vadd.f32 %v1467, %v1504
  %v1516 = vadd.f32 %v1468, %v1506
  %v1517 = vadd.f32 %v1469, %v1508
  %v1518 = vadd.f32 %v1470, %v1510
  %v1519 = vmul.f32 %v1515, %v30
  %v1520 = vmul.f32 %v1516, %v35
  %v1521 = vmul.f32 %v1517, %v40
  %v1522 = vmul.f32 %v1518, %v45
  %1527 = vrot.lane.b32.xlu0 %v1467, 4
  %v1528 = vpop.permute.xlu0 %1527
  %1529 = vrot.lane.b32.xlu0 %v1468, 4
  %v1530 = vpop.permute.xlu0 %1529
  %1531 = vrot.lane.b32.xlu0 %v1469, 4
  %v1532 = vpop.permute.xlu0 %1531
  %1533 = vrot.lane.b32.xlu0 %v1470, 4
  %v1534 = vpop.permute.xlu0 %1533
  %vm1539 = vcmask 31744
  %v1540 = vsel %vm1539, %v1519, %v1528
  %v1541 = vsel %vm1539, %v1520, %v1530
  %v1542 = vsel %vm1539, %v1521, %v1532
  %v1543 = vsel %vm1539, %v1522, %v1534
  %vm1544 = vcmask 64512
  %v1545 = vsel %vm1544, %v1540, %v1528
  %v1546 = vsel %vm1544, %v1541, %v1530
  %v1547 = vsel %vm1544, %v1542, %v1532
  %v1548 = vsel %vm1544, %v1543, %v1534
  %vm1549 = vcmask 97280
  %v1550 = vsel %vm1549, %v1545, 0.0
  %v1551 = vsel %vm1549, %v1546, 0.0
  %v1552 = vsel %vm1549, %v1547, 0.0
  %v1553 = vsel %vm1549, %v1548, 0.0
  %1554 = vst [vmem:[%s6] sm:$0xff] %v1550
  %1555 = vst [vmem:[%s6 + $0x8] sm:$0xff] %v1551
  %1556 = vst [vmem:[%s6 + $0x10] sm:$0xff] %v1552
  %1557 = vst [vmem:[%s6 + $0x18] sm:$0xff] %v1553
  // Predicated region
  $region26: #{posterior_encoder_pallas.1} parent=0 // pred_check
    _
  $region27: #{posterior_encoder_pallas.1} parent=0 // pred_check_branch
    %1559 = sbr.rel (0) target = $region29
  $region28: #{posterior_encoder_pallas.1} parent=0 // pred_region
    _
  $region29: #{posterior_encoder_pallas.1} parent=0 // pred_fallthru
    _
  // Predicated region
  $region30: #{posterior_encoder_pallas.1} parent=0 // pred_check
    _
  $region31: #{posterior_encoder_pallas.1} parent=0 // pred_check_branch
    %1561 = sbr.rel (0) target = $region33
  $region32: #{posterior_encoder_pallas.1} parent=0 // pred_region
    _
  $region33: #{posterior_encoder_pallas.1} parent=0 // pred_fallthru
    _

</llo_original>
